<compile_context>
chip_gen: v7x
topology: tpu7x:2x2x1
jax: 0.10.0
libtpu: 0.0.40
codegen_flags: <defaults>
</compile_context>

<pallas_src>
import jax
import jax.numpy as jnp
from jax.experimental import pallas as pl
from jax.experimental.pallas import tpu as pltpu

LANE = 128  # padded lane width for all feature dimensions


def molprop_kernel(x_ref, adj_ref, mask_ref, w_ref, c_ref, out_ref):
    # One grid step == GB graphs; R = GB*N rows form one full MXU slab.
    GB, N, Dp = x_ref.shape
    R = GB * N

    x = x_ref[...].reshape(R, Dp)           # (R, Dp)   bf16
    adj_bd = adj_ref[0]                     # (R, R)    bf16 block-diagonal adjacency
    mask = mask_ref[...]                    # (GB, N)   f32

    w_node = w_ref[0]                       # (Dp, Dp) bf16
    w_msg = w_ref[1]
    w_h = w_ref[2]
    w_out = w_ref[3]                        # output column placed at lanes [G, G+out_dim)
    b_node = c_ref[0:1, :]                  # (1, Dp) f32
    b_msg = c_ref[1:2, :]
    b_h = c_ref[2:3, :]
    b_out = c_ref[3:4, :]                   # nonzero only at lanes [G, G+out_dim)
    w_att = c_ref[4:5, :]                   # (1, Dp) f32 (attention vector)

    # --- encoder: node embedding (one full-slab MXU matmul) ---
    h = jnp.dot(x, w_node, preferred_element_type=jnp.float32) + b_node
    h = jnp.where(h > 0, h, 0.01 * h)       # leaky_relu in f32 on the VPU

    # --- encoder: one message-passing step (block-diagonal adjacency matmul on the MXU) ---
    m = jnp.dot(h.astype(w_msg.dtype), w_msg, preferred_element_type=jnp.float32) + b_msg
    agg = jnp.dot(adj_bd, m.astype(adj_bd.dtype), preferred_element_type=jnp.float32)
    h = jnp.maximum(h + agg, 0.0)           # (R, Dp) f32; padded-node masking is not needed
                                            # (adj is node-masked, alpha zeroes padded nodes)

    # --- encoder: attention-weighted readout -> graph embedding ---
    h3 = h.reshape(GB, N, Dp)
    scores = jnp.sum(h3 * w_att[None, :, :], axis=-1)          # (GB, N)
    # NOTE: b_att is an additive constant over all nodes -> no effect after softmax.
    scores = jnp.where(mask > 0, scores, -1e30)
    smax = jnp.max(scores, axis=-1, keepdims=True)              # (GB, 1)
    p = jnp.exp(scores - smax) * mask                           # (GB, N)
    denom = jnp.maximum(jnp.sum(p, axis=-1, keepdims=True), 1e-9)   # empty-graph guard
    alpha = p * pl.reciprocal(denom, approx=True)               # EUP reciprocal

    # weighted sum on the VPU (avoids 1-row-per-graph MXU matmuls)
    g = jnp.sum(h3 * alpha[:, :, None], axis=1)                 # (GB, Dp) f32

    # --- predictor: Dropout (identity at inference) -> Linear -> ReLU -> Linear ---
    hid = jnp.dot(g.astype(w_h.dtype), w_h, preferred_element_type=jnp.float32) + b_h
    hid = jnp.maximum(hid, 0.0)                                 # (GB, Dp), lanes >= H are 0
    pred = jnp.dot(hid.astype(w_out.dtype), w_out, preferred_element_type=jnp.float32) + b_out
    # pred is nonzero only at lanes [G, G+out_dim); g is nonzero only at lanes [0, G)
    # (both guaranteed by zero-padded weight columns), so a plain add merges the outputs.
    out_ref[...] = g + pred                                     # single lane-dense store


def _pad2(w, rows, cols):
    out = jnp.zeros((rows, cols), jnp.float32)
    return out.at[:w.shape[0], :w.shape[1]].set(w.astype(jnp.float32))


def _choose_gb(B, N, max_rows=512):
    """Pick graphs-per-block GB (divisor of B).

    Preference order: rows = GB*N <= max_rows (keeps the (rows^2) bf16 block-diag adjacency
    slab small, safe for v7x's 64 MiB VMEM), >= 2 grid blocks (both v7x TensorCores get
    work), rows a multiple of 256 (full v6e/v7x MXU slab), then the largest rows (amortize
    the ~0.35 us per-grid-step overhead; 128+ rows already saturates v5e's 4x128^2 MXU).
    """
    cands = [gb for gb in range(1, B + 1) if B % gb == 0]

    def score(gb):
        rows = gb * N
        return (rows <= max_rows, (B // gb) >= 2, rows % 256 == 0, rows)

    return max(cands, key=score)


def molprop_forward(x, adj, mask, params):
    B, N, F = x.shape
    G = params["w_node"].shape[1]
    H = params["w_h"].shape[1]
    out_dim = params["w_out"].shape[1]
    Dp = LANE
    assert max(F, G, H) <= Dp, "feature dims must fit a single 128-lane pad"
    assert G + out_dim <= Dp, "pred lanes must fit after the graph-embedding lanes"

    GB = _choose_gb(B, N)
    num_blocks = B // GB
    R = GB * N

    # --- pack inputs: pad features to 128 lanes, bf16 for matmul operands ---
    x_pad = jnp.zeros((B, N, Dp), jnp.float32).at[:, :, :F].set(x).astype(jnp.bfloat16)
    mask2d = mask[..., 0].astype(jnp.float32)                   # (B, N)

    # node-mask the adjacency explicitly (makes the "no padded-node messages" invariant
    # independent of the caller), then pack it block-diagonally per grid block.
    adj_m = adj * mask * jnp.swapaxes(mask, 1, 2)               # (B, N, N)
    adj_blocks = adj_m.reshape(num_blocks, GB, N, N)
    eye_gb = jnp.eye(GB, dtype=adj_m.dtype)
    adj_bd = jnp.einsum('bgij,gh->bgihj', adj_blocks, eye_gb)
    adj_bd = adj_bd.reshape(num_blocks, R, R).astype(jnp.bfloat16)

    # --- pack parameters: 4 stacked weight mats + one (8,128) constant slab ---
    # w_out / b_out are placed at lanes [G, G+out_dim) so the kernel can merge pred into
    # the graph-embedding slab with a single add.
    w_out_shift = jnp.zeros((Dp, Dp), jnp.float32)
    w_out_shift = w_out_shift.at[:H, G:G + out_dim].set(params["w_out"].astype(jnp.float32))
    w_stack = jnp.stack([
        _pad2(params["w_node"], Dp, Dp),
        _pad2(params["w_msg"], Dp, Dp),
        _pad2(params["w_h"], Dp, Dp),
        w_out_shift,
    ]).astype(jnp.bfloat16)                                     # (4, Dp, Dp)

    consts = jnp.zeros((8, Dp), jnp.float32)
    consts = consts.at[0, :G].set(params["b_node"].reshape(-1))
    consts = consts.at[1, :G].set(params["b_msg"].reshape(-1))
    consts = consts.at[2, :H].set(params["b_h"].reshape(-1))
    consts = consts.at[3, G:G + out_dim].set(params["b_out"].reshape(-1))
    consts = consts.at[4, :G].set(params["w_att"].reshape(-1))
    # b_att omitted: constant additive shift cancels in the softmax readout.

    out = pl.pallas_call(
        molprop_kernel,
        out_shape=jax.ShapeDtypeStruct((B, Dp), jnp.float32),   # merged pred + g_emb slab
        grid=(num_blocks,),
        in_specs=[
            pl.BlockSpec((GB, N, Dp), lambda b: (b, 0, 0)),
            pl.BlockSpec((1, R, R), lambda b: (b, 0, 0)),
            pl.BlockSpec((GB, N), lambda b: (b, 0)),
            pl.BlockSpec((4, Dp, Dp), lambda b: (0, 0, 0)),
            pl.BlockSpec((8, Dp), lambda b: (0, 0)),
        ],
        out_specs=pl.BlockSpec((GB, Dp), lambda b: (b, 0)),
        compiler_params=pltpu.CompilerParams(
            dimension_semantics=("parallel",),
            vmem_limit_bytes=32 * 1024 * 1024,
        ),
    )(x_pad, adj_bd, mask2d, w_stack, consts)

    pred = out[:, G:G + out_dim]
    g_emb = out[:, :G]
    return pred, g_emb


def init_params(key, atom_feat, graph_feat, hidden, out_dim=1):
    ks = jax.random.split(key, 5)
    scale = 0.1
    return {
        "w_node": scale * jax.random.normal(ks[0], (atom_feat, graph_feat), jnp.float32),
        "b_node": jnp.zeros((1, graph_feat), jnp.float32),
        "w_msg":  scale * jax.random.normal(ks[1], (graph_feat, graph_feat), jnp.float32),
        "b_msg":  jnp.zeros((1, graph_feat), jnp.float32),
        "w_att":  scale * jax.random.normal(ks[2], (graph_feat, 1), jnp.float32),
        "b_att":  jnp.zeros((1, 1), jnp.float32),
        "w_h":    scale * jax.random.normal(ks[3], (graph_feat, hidden), jnp.float32),
        "b_h":    jnp.zeros((1, hidden), jnp.float32),
        "w_out":  scale * jax.random.normal(ks[4], (hidden, out_dim), jnp.float32),
        "b_out":  jnp.zeros((1, out_dim), jnp.float32),
    }


if __name__ == "__main__":
    key = jax.random.PRNGKey(0)
    k_x, k_adj, k_p = jax.random.split(key, 3)

    B, N = 32, 16           # 32 graphs of 16 padded nodes -> 2 grid steps of 16 graphs (256 rows)
    ATOM_FEAT = 32          # args['atom_feat_size']
    GRAPH_FEAT = 32         # args['graph_feat_size']
    HIDDEN = 64             # args['predictor_hidden_feats']
    # TODO(synk): edge_feat_size is unused because edge-conditioned message passing
    #             of Intra_AttentiveFP is not reproduced (definition unavailable).

    x = jax.random.normal(k_x, (B, N, ATOM_FEAT), jnp.float32)

    # node mask: half the graphs have 12 real nodes, half have 16
    n_nodes = jnp.concatenate([jnp.full((B // 2,), 12, jnp.int32),
                               jnp.full((B // 2,), 16, jnp.int32)])
    mask = (jnp.arange(N)[None, :] < n_nodes[:, None]).astype(jnp.float32)[..., None]

    # random symmetric adjacency, zero diagonal, restricted to real nodes
    a = (jax.random.uniform(k_adj, (B, N, N)) < 0.3).astype(jnp.float32)
    adj = jnp.maximum(a, jnp.swapaxes(a, 1, 2))
    adj = adj * (1.0 - jnp.eye(N)[None])
    adj = adj * mask * jnp.swapaxes(mask, 1, 2)

    params = init_params(k_p, ATOM_FEAT, GRAPH_FEAT, HIDDEN)

    pred, g_emb = molprop_forward(x, adj, mask, params)
    jax.block_until_ready((pred, g_emb))

    assert pred.shape == (B, 1) and g_emb.shape == (B, GRAPH_FEAT)
    assert bool(jnp.all(jnp.isfinite(pred))) and bool(jnp.all(jnp.isfinite(g_emb)))
    print("KERNEL_OK")
</pallas_src>

<mosaic_0001>
module attributes {stable_mosaic.version = 11 : i64} {
  func.func @molprop_kernel(%arg0: i32, %arg1: memref<16x16x128xbf16, #tpu.memory_space<vmem>>, %arg2: memref<1x256x256xbf16, #tpu.memory_space<vmem>>, %arg3: memref<16x16xf32, #tpu.memory_space<vmem>>, %arg4: memref<4x128x128xbf16, #tpu.memory_space<vmem>>, %arg5: memref<8x128xf32, #tpu.memory_space<vmem>>, %arg6: memref<16x128xf32, #tpu.memory_space<vmem>>) attributes {dimension_semantics = [#tpu.dimension_semantics<parallel>], iteration_bounds = array<i64: 2>, scalar_prefetch = 0 : i64, scratch_operands = 0 : i64, tpu.core_type = #tpu.core_type<tc>, window_params = [{transform_indices = @transform_0, window_bounds = array<i64: 16, 16, 128>}, {transform_indices = @transform_1, window_bounds = array<i64: 1, 256, 256>}, {transform_indices = @transform_2, window_bounds = array<i64: 16, 16>}, {pipeline_mode = #tpu.pipeline_mode<synchronous>, transform_indices = @transform_3, window_bounds = array<i64: 4, 128, 128>}, {pipeline_mode = #tpu.pipeline_mode<synchronous>, transform_indices = @transform_4, window_bounds = array<i64: 8, 128>}, {transform_indices = @transform_5, window_bounds = array<i64: 16, 128>}]} {
    %c0 = arith.constant 0 : index
    %c0_0 = arith.constant 0 : index
    %c0_1 = arith.constant 0 : index
    %0 = vector.load %arg1[%c0, %c0_0, %c0_1] : memref<16x16x128xbf16, #tpu.memory_space<vmem>>, vector<16x16x128xbf16>
    %1 = vector.shape_cast %0 : vector<16x16x128xbf16> to vector<256x128xbf16>
    %c0_2 = arith.constant 0 : index
    %c0_3 = arith.constant 0 : index
    %c0_4 = arith.constant 0 : index
    %2 = vector.load %arg2[%c0_2, %c0_3, %c0_4] : memref<1x256x256xbf16, #tpu.memory_space<vmem>>, vector<1x256x256xbf16>
    %3 = vector.shape_cast %2 : vector<1x256x256xbf16> to vector<256x256xbf16>
    %c0_5 = arith.constant 0 : index
    %c0_6 = arith.constant 0 : index
    %4 = vector.load %arg3[%c0_5, %c0_6] : memref<16x16xf32, #tpu.memory_space<vmem>>, vector<16x16xf32>
    %c0_7 = arith.constant 0 : index
    %c0_8 = arith.constant 0 : index
    %c0_9 = arith.constant 0 : index
    %5 = vector.load %arg4[%c0_7, %c0_8, %c0_9] : memref<4x128x128xbf16, #tpu.memory_space<vmem>>, vector<1x128x128xbf16>
    %6 = vector.shape_cast %5 : vector<1x128x128xbf16> to vector<128x128xbf16>
    %c1 = arith.constant 1 : index
    %c0_10 = arith.constant 0 : index
    %c0_11 = arith.constant 0 : index
    %7 = vector.load %arg4[%c1, %c0_10, %c0_11] : memref<4x128x128xbf16, #tpu.memory_space<vmem>>, vector<1x128x128xbf16>
    %8 = vector.shape_cast %7 : vector<1x128x128xbf16> to vector<128x128xbf16>
    %c2 = arith.constant 2 : index
    %c0_12 = arith.constant 0 : index
    %c0_13 = arith.constant 0 : index
    %9 = vector.load %arg4[%c2, %c0_12, %c0_13] : memref<4x128x128xbf16, #tpu.memory_space<vmem>>, vector<1x128x128xbf16>
    %10 = vector.shape_cast %9 : vector<1x128x128xbf16> to vector<128x128xbf16>
    %c3 = arith.constant 3 : index
    %c0_14 = arith.constant 0 : index
    %c0_15 = arith.constant 0 : index
    %11 = vector.load %arg4[%c3, %c0_14, %c0_15] : memref<4x128x128xbf16, #tpu.memory_space<vmem>>, vector<1x128x128xbf16>
    %12 = vector.shape_cast %11 : vector<1x128x128xbf16> to vector<128x128xbf16>
    %c0_16 = arith.constant 0 : index
    %c0_17 = arith.constant 0 : index
    %13 = vector.load %arg5[%c0_16, %c0_17] : memref<8x128xf32, #tpu.memory_space<vmem>>, vector<1x128xf32>
    %c1_18 = arith.constant 1 : index
    %c0_19 = arith.constant 0 : index
    %14 = vector.load %arg5[%c1_18, %c0_19] : memref<8x128xf32, #tpu.memory_space<vmem>>, vector<1x128xf32>
    %c2_20 = arith.constant 2 : index
    %c0_21 = arith.constant 0 : index
    %15 = vector.load %arg5[%c2_20, %c0_21] : memref<8x128xf32, #tpu.memory_space<vmem>>, vector<1x128xf32>
    %c3_22 = arith.constant 3 : index
    %c0_23 = arith.constant 0 : index
    %16 = vector.load %arg5[%c3_22, %c0_23] : memref<8x128xf32, #tpu.memory_space<vmem>>, vector<1x128xf32>
    %c4 = arith.constant 4 : index
    %c0_24 = arith.constant 0 : index
    %17 = vector.load %arg5[%c4, %c0_24] : memref<8x128xf32, #tpu.memory_space<vmem>>, vector<1x128xf32>
    %cst = arith.constant dense<0.000000e+00> : vector<256x128xf32>
    %18 = tpu.matmul %1, %6, %cst {dimension_numbers = #tpu.dot_dimension_numbers<[1], [0], [0], [1], [0, 0, 1, 1], [], []>} : vector<256x128xbf16>, vector<128x128xbf16>, vector<256x128xf32> -> vector<256x128xf32>
    %19 = vector.broadcast %13 : vector<1x128xf32> to vector<256x128xf32>
    %20 = arith.addf %18, %19 : vector<256x128xf32>
    %cst_25 = arith.constant 0.000000e+00 : f32
    %21 = vector.broadcast %cst_25 : f32 to vector<256x128xf32>
    %22 = arith.cmpf ogt, %20, %21 : vector<256x128xf32>
    %cst_26 = arith.constant 0.00999999977 : f32
    %23 = vector.broadcast %cst_26 : f32 to vector<256x128xf32>
    %24 = arith.mulf %23, %20 : vector<256x128xf32>
    %25 = arith.select %22, %20, %24 : vector<256x128xi1>, vector<256x128xf32>
    %26 = arith.truncf %25 : vector<256x128xf32> to vector<256x128xbf16>
    %cst_27 = arith.constant dense<0.000000e+00> : vector<256x128xf32>
    %27 = tpu.matmul %26, %8, %cst_27 {dimension_numbers = #tpu.dot_dimension_numbers<[1], [0], [0], [1], [0, 0, 1, 1], [], []>} : vector<256x128xbf16>, vector<128x128xbf16>, vector<256x128xf32> -> vector<256x128xf32>
    %28 = vector.broadcast %14 : vector<1x128xf32> to vector<256x128xf32>
    %29 = arith.addf %27, %28 : vector<256x128xf32>
    %30 = arith.truncf %29 : vector<256x128xf32> to vector<256x128xbf16>
    %cst_28 = arith.constant dense<0.000000e+00> : vector<256x128xf32>
    %31 = tpu.matmul %3, %30, %cst_28 {dimension_numbers = #tpu.dot_dimension_numbers<[1], [0], [0], [1], [0, 0, 1, 1], [], []>} : vector<256x256xbf16>, vector<256x128xbf16>, vector<256x128xf32> -> vector<256x128xf32>
    %32 = arith.addf %25, %31 : vector<256x128xf32>
    %cst_29 = arith.constant 0.000000e+00 : f32
    %33 = vector.broadcast %cst_29 : f32 to vector<256x128xf32>
    %34 = arith.maximumf %32, %33 : vector<256x128xf32>
    %35 = vector.shape_cast %34 : vector<256x128xf32> to vector<16x16x128xf32>
    %36 = vector.shape_cast %17 : vector<1x128xf32> to vector<1x1x128xf32>
    %37 = vector.broadcast %36 : vector<1x1x128xf32> to vector<16x16x128xf32>
    %38 = arith.mulf %35, %37 : vector<16x16x128xf32>
    %cst_30 = arith.constant dense<0.000000e+00> : vector<16x16xf32>
    %39 = vector.multi_reduction <add>, %38, %cst_30 [2] : vector<16x16x128xf32> to vector<16x16xf32>
    %cst_31 = arith.constant 0.000000e+00 : f32
    %40 = vector.broadcast %cst_31 : f32 to vector<16x16xf32>
    %41 = arith.cmpf ogt, %4, %40 : vector<16x16xf32>
    %cst_32 = arith.constant -1.000000e+30 : f32
    %42 = vector.broadcast %cst_32 : f32 to vector<16x16xf32>
    %43 = arith.select %41, %39, %42 : vector<16x16xi1>, vector<16x16xf32>
    %cst_33 = arith.constant dense<0xFF800000> : vector<16xf32>
    %44 = vector.multi_reduction <maximumf>, %43, %cst_33 [1] : vector<16x16xf32> to vector<16xf32>
    %45 = vector.shape_cast %44 : vector<16xf32> to vector<16x1xf32>
    %46 = vector.broadcast %45 : vector<16x1xf32> to vector<16x16xf32>
    %47 = arith.subf %43, %46 : vector<16x16xf32>
    %48 = math.exp %47 : vector<16x16xf32>
    %49 = arith.mulf %48, %4 : vector<16x16xf32>
    %cst_34 = arith.constant dense<0.000000e+00> : vector<16xf32>
    %50 = vector.multi_reduction <add>, %49, %cst_34 [1] : vector<16x16xf32> to vector<16xf32>
    %51 = vector.shape_cast %50 : vector<16xf32> to vector<16x1xf32>
    %cst_35 = arith.constant 9.99999971E-10 : f32
    %52 = vector.broadcast %cst_35 : f32 to vector<16x1xf32>
    %53 = arith.maximumf %51, %52 : vector<16x1xf32>
    %54 = tpu.reciprocal %53 {approx = true} : vector<16x1xf32> -> vector<16x1xf32>
    %55 = vector.broadcast %54 : vector<16x1xf32> to vector<16x16xf32>
    %56 = arith.mulf %49, %55 : vector<16x16xf32>
    %57 = vector.shape_cast %56 : vector<16x16xf32> to vector<16x16x1xf32>
    %58 = vector.broadcast %57 : vector<16x16x1xf32> to vector<16x16x128xf32>
    %59 = arith.mulf %35, %58 : vector<16x16x128xf32>
    %cst_36 = arith.constant dense<0.000000e+00> : vector<16x128xf32>
    %60 = vector.multi_reduction <add>, %59, %cst_36 [1] : vector<16x16x128xf32> to vector<16x128xf32>
    %61 = arith.truncf %60 : vector<16x128xf32> to vector<16x128xbf16>
    %cst_37 = arith.constant dense<0.000000e+00> : vector<16x128xf32>
    %62 = tpu.matmul %61, %10, %cst_37 {dimension_numbers = #tpu.dot_dimension_numbers<[1], [0], [0], [1], [0, 0, 1, 1], [], []>} : vector<16x128xbf16>, vector<128x128xbf16>, vector<16x128xf32> -> vector<16x128xf32>
    %63 = vector.broadcast %15 : vector<1x128xf32> to vector<16x128xf32>
    %64 = arith.addf %62, %63 : vector<16x128xf32>
    %cst_38 = arith.constant 0.000000e+00 : f32
    %65 = vector.broadcast %cst_38 : f32 to vector<16x128xf32>
    %66 = arith.maximumf %64, %65 : vector<16x128xf32>
    %67 = arith.truncf %66 : vector<16x128xf32> to vector<16x128xbf16>
    %cst_39 = arith.constant dense<0.000000e+00> : vector<16x128xf32>
    %68 = tpu.matmul %67, %12, %cst_39 {dimension_numbers = #tpu.dot_dimension_numbers<[1], [0], [0], [1], [0, 0, 1, 1], [], []>} : vector<16x128xbf16>, vector<128x128xbf16>, vector<16x128xf32> -> vector<16x128xf32>
    %69 = vector.broadcast %16 : vector<1x128xf32> to vector<16x128xf32>
    %70 = arith.addf %68, %69 : vector<16x128xf32>
    %71 = arith.addf %60, %70 : vector<16x128xf32>
    %c0_40 = arith.constant 0 : index
    %c0_41 = arith.constant 0 : index
    %72 = vector.load %arg6[%c0_40, %c0_41] : memref<16x128xf32, #tpu.memory_space<vmem>>, vector<16x128xf32>
    tpu.vector_store %arg6[%c0_40, %c0_41], %71 {strides = array<i32>} : memref<16x128xf32, #tpu.memory_space<vmem>>, vector<16x128xf32>,
    return
  }
  func.func @transform_0(%arg0: i32) -> (i32, i32, i32) {
    %c0_i32 = arith.constant 0 : i32
    %c0_i32_0 = arith.constant 0 : i32
    %c0_i32_1 = arith.constant 0 : i32
    return %arg0, %c0_i32, %c0_i32_0 : i32, i32, i32
  }
  func.func @transform_1(%arg0: i32) -> (i32, i32, i32) {
    %c0_i32 = arith.constant 0 : i32
    %c0_i32_0 = arith.constant 0 : i32
    %c0_i32_1 = arith.constant 0 : i32
    return %arg0, %c0_i32, %c0_i32_0 : i32, i32, i32
  }
  func.func @transform_2(%arg0: i32) -> (i32, i32) {
    %c0_i32 = arith.constant 0 : i32
    %c0_i32_0 = arith.constant 0 : i32
    return %arg0, %c0_i32 : i32, i32
  }
  func.func @transform_3(%arg0: i32) -> (i32, i32, i32) {
    %c0_i32 = arith.constant 0 : i32
    %c0_i32_0 = arith.constant 0 : i32
    %c0_i32_1 = arith.constant 0 : i32
    %c0_i32_2 = arith.constant 0 : i32
    return %c0_i32, %c0_i32_0, %c0_i32_1 : i32, i32, i32
  }
  func.func @transform_4(%arg0: i32) -> (i32, i32) {
    %c0_i32 = arith.constant 0 : i32
    %c0_i32_0 = arith.constant 0 : i32
    %c0_i32_1 = arith.constant 0 : i32
    return %c0_i32, %c0_i32_0 : i32, i32
  }
  func.func @transform_5(%arg0: i32) -> (i32, i32) {
    %c0_i32 = arith.constant 0 : i32
    %c0_i32_0 = arith.constant 0 : i32
    return %arg0, %c0_i32 : i32, i32
  }
}

</mosaic_0001>

<llo_original>
// kernel: tpu_custom_call.1
$region0: #{tpu_custom_call.1}
  #allocation0 [shape = 'u32[]', space=smem, size = 0x4, offset = 0x4, fixed_abs, tag = 'smem constant byte address 0x4 - core index']
  #allocation1 [shape = 'u32[144,128]{1,0:T(1,128)}', space=vmem, size = 0x12000, scoped, tag = 'internal scratch']
  %s0 = inlined_call_operand.hbm [shape: bf16[32,16,128], index: 0, kind: input, shape index: {}]
  %s1 = inlined_call_operand.hbm [shape: bf16[2,256,256], index: 1, kind: input, shape index: {}]
  %s2 = inlined_call_operand.vmem [shape: f32[32,16], index: 2, kind: input, shape index: {}]
  %s3 = inlined_call_operand.hbm [shape: bf16[4,128,128], index: 3, kind: input, shape index: {}]
  %s4 = inlined_call_operand.vmem [shape: f32[8,128], index: 4, kind: input, shape index: {}]
  %s5 = inlined_call_operand.hbm [shape: f32[32,128], index: 5, kind: output, shape index: {}]
  %s6 = sld [smem:[#allocation0]]
  $region65: #{tpu_custom_call.1} parent=0
    _
  %s8 = ssub.s32 1, %s6
  %s9 = scalar_select 0, %s8, %s6
  $region1: #{tpu_custom_call.1} parent=0
    #allocation2 [shape = 'u8[131072]{0}', space=vmem, size = 0x20000, scoped, tag = 'input window, operand 0']
    #allocation3 [shape = 's32[2]{0}', space=sflag, size = 0x8, scoped, tag = 'scoped memory for tpu_custom_call.1']
    #allocation4 [shape = 's32[2]{0}', space=sflag, size = 0x8, scoped, tag = 'scoped memory for tpu_custom_call.1']
    #allocation5 [shape = 'u8[262144]{0}', space=vmem, size = 0x40000, scoped, tag = 'input window, operand 1']
    #allocation6 [shape = 's32[2]{0}', space=sflag, size = 0x8, scoped, tag = 'scoped memory for tpu_custom_call.1']
    #allocation7 [shape = 'u8[131072]{0}', space=vmem, size = 0x20000, scoped, tag = 'input window, operand 3, single buffered']
    #allocation8 [shape = 'u8[16384]{0}', space=vmem, size = 0x4000, scoped, tag = 'output window, operand 0']
    %10 = vsyncpa [#allocation3], 0
    %s11 = scalar_lea.sflag [#allocation3], 1
    %12 = vsyncpa %s11, 0
    %13 = vsyncpa [#allocation6], 0
    %s14 = scalar_lea.sflag [#allocation6], 1
    %15 = vsyncpa %s14, 0
    %16 = vsyncpa [#allocation4], 0
    %s17 = scalar_lea.sflag [#allocation4], 1
    %18 = vsyncpa %s17, 0
    loop: start=0, step=1, limit=4
    $region2: #{tpu_custom_call.1} parent=1 // loop_pre_header
      _
    $region3: #{tpu_custom_call.1} parent=1 // loop_header
      %s20 = sphi 0, %s24
      %p21 = scmp.ge.s32.totalorder %s20, 4
      %s30 = sphi 0, %s32
      %s33 = sphi 0, %s30
      %s34 = sphi 0, %s33
      %s50 = sphi 0, %s34
      %s56 = sphi 0, %s58
      %s59 = sphi 0, %s56
      %s60 = sphi 0, %s59
      %s76 = sphi 0, %s60
      %s82 = sphi 0, %s84
      %s85 = sphi 0, %s82
      %s86 = sphi 0, %s85
      %s102 = sphi 0, %s86
      %s106 = sphi 0, %s106
      %s108 = sphi 0, %s106
      %s109 = sphi 0, %s108
      %s123 = sphi 0, %s109
      %s127 = sphi 0, %s127
      %s129 = sphi 0, %s127
      %s130 = sphi 0, %s129
      %s144 = sphi 0, %s130
      %s150 = sphi 0, %s152
      %s153 = sphi 0, %s150
      %s154 = sphi 0, %s153
      %s170 = sphi 0, %s154
    $region4: #{tpu_custom_call.1} parent=1 // loop_header_branch
      %23 = sbr.rel (%p21) target = $region8
    $region5: #{tpu_custom_call.1} parent=1 // loop_body
      %s25 = ssub.s32 %s20, 1
      %s26 = ssub.s32 %s20, 2
      %s27 = sadd.s32 %s20, 1
      %s28 = ssub.s32 %s20, %s27
      %p29 = scmp.eq.s32.totalorder %s28, 0
      %s31 = sadd.s32 %s30, 1
      %s32 = scalar_select %p29, %s30, %s31
      %p35 = pneg %p29
      %p36 = scmp.eq.s32.totalorder %s20, 1
      %p37 = por %p35, %p36
      %p38 = scmp.ne.s32.totalorder %s30, %s33
      %p39 = scmp.eq.s32.totalorder %s20, 0
      %p40 = por %p38, %p39
      %p41 = scmp.ne.s32.totalorder %s30, %s33
      %p42 = scmp.eq.s32.totalorder %s25, 1
      %p43 = por %p41, %p42
      %p44 = scmp.ne.s32.totalorder %s33, %s34
      %p45 = scmp.eq.s32.totalorder %s25, 0
      %p46 = por %p44, %p45
      %p47 = scmp.ne.s32.totalorder %s33, %s34
      %p48 = scmp.eq.s32.totalorder %s26, 1
      %p49 = por %p47, %p48
      %p51 = scmp.ne.s32.totalorder %s34, %s50
      %p52 = scmp.eq.s32.totalorder %s26, 0
      %p53 = por %p51, %p52
      %s54 = ssub.s32 %s20, %s27
      %p55 = scmp.eq.s32.totalorder %s54, 0
      %s57 = sadd.s32 %s56, 1
      %s58 = scalar_select %p55, %s56, %s57
      %p61 = pneg %p55
      %p62 = scmp.eq.s32.totalorder %s20, 1
      %p63 = por %p61, %p62
      %p64 = scmp.ne.s32.totalorder %s56, %s59
      %p65 = scmp.eq.s32.totalorder %s20, 0
      %p66 = por %p64, %p65
      %p67 = scmp.ne.s32.totalorder %s56, %s59
      %p68 = scmp.eq.s32.totalorder %s25, 1
      %p69 = por %p67, %p68
      %p70 = scmp.ne.s32.totalorder %s59, %s60
      %p71 = scmp.eq.s32.totalorder %s25, 0
      %p72 = por %p70, %p71
      %p73 = scmp.ne.s32.totalorder %s59, %s60
      %p74 = scmp.eq.s32.totalorder %s26, 1
      %p75 = por %p73, %p74
      %p77 = scmp.ne.s32.totalorder %s60, %s76
      %p78 = scmp.eq.s32.totalorder %s26, 0
      %p79 = por %p77, %p78
      %s80 = ssub.s32 %s20, %s27
      %p81 = scmp.eq.s32.totalorder %s80, 0
      %s83 = sadd.s32 %s82, 1
      %s84 = scalar_select %p81, %s82, %s83
      %p87 = pneg %p81
      %p88 = scmp.eq.s32.totalorder %s20, 1
      %p89 = por %p87, %p88
      %p90 = scmp.ne.s32.totalorder %s82, %s85
      %p91 = scmp.eq.s32.totalorder %s20, 0
      %p92 = por %p90, %p91
      %p93 = scmp.ne.s32.totalorder %s82, %s85
      %p94 = scmp.eq.s32.totalorder %s25, 1
      %p95 = por %p93, %p94
      %p96 = scmp.ne.s32.totalorder %s85, %s86
      %p97 = scmp.eq.s32.totalorder %s25, 0
      %p98 = por %p96, %p97
      %p99 = scmp.ne.s32.totalorder %s85, %s86
      %p100 = scmp.eq.s32.totalorder %s26, 1
      %p101 = por %p99, %p100
      %p103 = scmp.ne.s32.totalorder %s86, %s102
      %p104 = scmp.eq.s32.totalorder %s26, 0
      %p105 = por %p103, %p104
      %s107 = sadd.s32 %s106, 1
      %p110 = scmp.eq.s32.totalorder %s20, 1
      %p111 = scmp.ne.s32.totalorder %s106, %s108
      %p112 = scmp.eq.s32.totalorder %s20, 0
      %p113 = por %p111, %p112
      %p114 = scmp.ne.s32.totalorder %s106, %s108
      %p115 = scmp.eq.s32.totalorder %s25, 1
      %p116 = por %p114, %p115
      %p117 = scmp.ne.s32.totalorder %s108, %s109
      %p118 = scmp.eq.s32.totalorder %s25, 0
      %p119 = por %p117, %p118
      %p120 = scmp.ne.s32.totalorder %s108, %s109
      %p121 = scmp.eq.s32.totalorder %s26, 1
      %p122 = por %p120, %p121
      %p124 = scmp.ne.s32.totalorder %s109, %s123
      %p125 = scmp.eq.s32.totalorder %s26, 0
      %p126 = por %p124, %p125
      %s128 = sadd.s32 %s127, 1
      %p131 = scmp.eq.s32.totalorder %s20, 1
      %p132 = scmp.ne.s32.totalorder %s127, %s129
      %p133 = scmp.eq.s32.totalorder %s20, 0
      %p134 = por %p132, %p133
      %p135 = scmp.ne.s32.totalorder %s127, %s129
      %p136 = scmp.eq.s32.totalorder %s25, 1
      %p137 = por %p135, %p136
      %p138 = scmp.ne.s32.totalorder %s129, %s130
      %p139 = scmp.eq.s32.totalorder %s25, 0
      %p140 = por %p138, %p139
      %p141 = scmp.ne.s32.totalorder %s129, %s130
      %p142 = scmp.eq.s32.totalorder %s26, 1
      %p143 = por %p141, %p142
      %p145 = scmp.ne.s32.totalorder %s130, %s144
      %p146 = scmp.eq.s32.totalorder %s26, 0
      %p147 = por %p145, %p146
      %s148 = ssub.s32 %s20, %s27
      %p149 = scmp.eq.s32.totalorder %s148, 0
      %s151 = sadd.s32 %s150, 1
      %s152 = scalar_select %p149, %s150, %s151
      %p155 = pneg %p149
      %p156 = scmp.eq.s32.totalorder %s20, 1
      %p157 = por %p155, %p156
      %p158 = scmp.ne.s32.totalorder %s150, %s153
      %p159 = scmp.eq.s32.totalorder %s20, 0
      %p160 = por %p158, %p159
      %p161 = scmp.ne.s32.totalorder %s150, %s153
      %p162 = scmp.eq.s32.totalorder %s25, 1
      %p163 = por %p161, %p162
      %p164 = scmp.ne.s32.totalorder %s153, %s154
      %p165 = scmp.eq.s32.totalorder %s25, 0
      %p166 = por %p164, %p165
      %p167 = scmp.ne.s32.totalorder %s153, %s154
      %p168 = scmp.eq.s32.totalorder %s26, 1
      %p169 = por %p167, %p168
      %p171 = scmp.ne.s32.totalorder %s154, %s170
      %p172 = scmp.eq.s32.totalorder %s26, 0
      %p173 = por %p171, %p172
      %p174 = scmp.le.s32.totalorder 1, %s20
      %p175 = scmp.lt.s32.totalorder %s20, 3
      %p176 = pnand %p174, %p175
      %p177 = pneg %p176
      // Predicated region
      $region9: #{tpu_custom_call.1} parent=5 // pred_check
        _
      $region10: #{tpu_custom_call.1} parent=5 // pred_check_branch
        %179 = sbr.rel (%p176) target = $region12
      $region11: #{tpu_custom_call.1} parent=5 // pred_region
        %s180 = ssub.s32 %s20, 1
        // Predicated region
        $region13: #{tpu_custom_call.1} parent=11 // pred_check
          %p181 = pneg %p119
        $region14: #{tpu_custom_call.1} parent=11 // pred_check_branch
          %183 = sbr.rel (%p181) target = $region16
        $region15: #{tpu_custom_call.1} parent=11 // pred_region
          %s185 = ssub.s32 4096, 4096
          %186 = vsyncadd [#allocation6], %s185
          %s187 = sshll.u32 [#allocation7], 4
          %s188 = int_to_ptr.vmem [resolvable:$true] %s187
          %193 = dma.hbm_to_vmem [thread:$0]  %s3, 4096, %s188, [#allocation6], 64, 64, 4
        $region16: #{tpu_custom_call.1} parent=11 // pred_fallthru
          _
        // Predicated region
        $region17: #{tpu_custom_call.1} parent=11 // pred_check
          %p194 = pneg %p140
        $region18: #{tpu_custom_call.1} parent=11 // pred_check_branch
          %196 = sbr.rel (%p194) target = $region20
        $region19: #{tpu_custom_call.1} parent=11 // pred_region
          _
        $region20: #{tpu_custom_call.1} parent=11 // pred_fallthru
          _
      $region12: #{tpu_custom_call.1} parent=5 // pred_fallthru
        _
      %p197 = scmp.lt.s32.totalorder %s20, 2
      // Predicated region
      $region21: #{tpu_custom_call.1} parent=5 // pred_check
        %p198 = pneg %p197
      $region22: #{tpu_custom_call.1} parent=5 // pred_check_branch
        %200 = sbr.rel (%p198) target = $region24
      $region23: #{tpu_custom_call.1} parent=5 // pred_region
        // Predicated region
        $region25: #{tpu_custom_call.1} parent=23 // pred_check
          %p201 = pneg %p40
        $region26: #{tpu_custom_call.1} parent=23 // pred_check_branch
          %203 = sbr.rel (%p201) target = $region28
        $region27: #{tpu_custom_call.1} parent=23 // pred_region
          %s204 = sand.u32 %s30, 1
          %s205 = scalar_lea.sflag [#allocation3], %s204
          %s206 = sand.u32 %s30, 1
          %s207 = smul.addr %s206, 128
          %s208 = scalar_lea.vmem [#allocation2], %s207
          %s209 = smul.u32 16, %s20
          %s211 = ssub.s32 2048, 2048
          %212 = vsyncadd %s205, %s211
          %s213 = smul.addr %s209, 2
          %s214 = smul.addr %s213, 64
          %s215 = scalar_lea.hbm %s0, %s214
          %s216 = sshll.u32 %s208, 4
          %s217 = int_to_ptr.vmem [resolvable:$true] %s216
          %222 = dma.hbm_to_vmem [thread:$0]  %s215, 2048, %s217, %s205, 64, 64, 4
        $region28: #{tpu_custom_call.1} parent=23 // pred_fallthru
          _
        // Predicated region
        $region29: #{tpu_custom_call.1} parent=23 // pred_check
          %p223 = pneg %p66
        $region30: #{tpu_custom_call.1} parent=23 // pred_check_branch
          %225 = sbr.rel (%p223) target = $region32
        $region31: #{tpu_custom_call.1} parent=23 // pred_region
          %s226 = sand.u32 %s20, 1
          %s227 = scalar_lea.sflag [#allocation6], %s226
          %s228 = sand.u32 %s56, 1
          %s229 = smul.addr %s228, 256
          %s230 = scalar_lea.vmem [#allocation5], %s229
          %s232 = ssub.s32 4096, 4096
          %233 = vsyncadd %s227, %s232
          %s234 = smul.addr %s20, 64
          %s235 = smul.addr %s234, 64
          %s236 = scalar_lea.hbm %s1, %s235
          %s237 = sshll.u32 %s230, 4
          %s238 = int_to_ptr.vmem [resolvable:$true] %s237
          %243 = dma.hbm_to_vmem [thread:$0]  %s236, 4096, %s238, %s227, 128, 128, 8
        $region32: #{tpu_custom_call.1} parent=23 // pred_fallthru
          _
        // Predicated region
        $region33: #{tpu_custom_call.1} parent=23 // pred_check
          %p244 = pneg %p92
        $region34: #{tpu_custom_call.1} parent=23 // pred_check_branch
          %246 = sbr.rel (%p244) target = $region36
        $region35: #{tpu_custom_call.1} parent=23 // pred_region
          %s247 = smul.u32 2, %s20
          %p248 = scmp.lt.s32.totalorder %s247, 3
          %s249 = scalar_select %p248, %s247, 3
          %s250 = smul.addr %s249, 8
          %s251 = scalar_lea.vmem %s2, %s250
          %s252 = smul.u32 2, %s20
        $region36: #{tpu_custom_call.1} parent=23 // pred_fallthru
          _
      $region24: #{tpu_custom_call.1} parent=5 // pred_fallthru
        _
      %p253 = scmp.le.s32.totalorder 1, %s20
      %p254 = scmp.lt.s32.totalorder %s20, 3
      %p255 = pnand %p253, %p254
      %p256 = pneg %p255
      // Predicated region
      $region37: #{tpu_custom_call.1} parent=5 // pred_check
        _
      $region38: #{tpu_custom_call.1} parent=5 // pred_check_branch
        %258 = sbr.rel (%p255) target = $region40
      $region39: #{tpu_custom_call.1} parent=5 // pred_region
        %s259 = ssub.s32 %s20, 1
        %s260 = sand.u32 %s33, 1
        %s261 = scalar_lea.sflag [#allocation3], %s260
        %s262 = sand.u32 %s33, 1
        %s263 = smul.addr %s262, 128
        %s264 = scalar_lea.vmem [#allocation2], %s263
        // Predicated region
        $region41: #{tpu_custom_call.1} parent=39 // pred_check
          %p265 = pneg %p46
        $region42: #{tpu_custom_call.1} parent=39 // pred_check_branch
          %267 = sbr.rel (%p265) target = $region44
        $region43: #{tpu_custom_call.1} parent=39 // pred_region
          %268 = dma.done %s261, 2048
        $region44: #{tpu_custom_call.1} parent=39 // pred_fallthru
          _
        %s269 = sand.u32 %s25, 1
        %s270 = scalar_lea.sflag [#allocation6], %s269
        %s271 = sand.u32 %s59, 1
        %s272 = smul.addr %s271, 256
        %s273 = scalar_lea.vmem [#allocation5], %s272
        // Predicated region
        $region45: #{tpu_custom_call.1} parent=39 // pred_check
          %p274 = pneg %p72
        $region46: #{tpu_custom_call.1} parent=39 // pred_check_branch
          %276 = sbr.rel (%p274) target = $region48
        $region47: #{tpu_custom_call.1} parent=39 // pred_region
          %277 = dma.done %s270, 4096
        $region48: #{tpu_custom_call.1} parent=39 // pred_fallthru
          _
        // Predicated region
        $region49: #{tpu_custom_call.1} parent=39 // pred_check
          %p278 = pneg %p119
        $region50: #{tpu_custom_call.1} parent=39 // pred_check_branch
          %280 = sbr.rel (%p278) target = $region52
        $region51: #{tpu_custom_call.1} parent=39 // pred_region
          %281 = dma.done [#allocation6], 4096
        $region52: #{tpu_custom_call.1} parent=39 // pred_fallthru
          _
        %s282 = sand.u32 %s33, 1
        %s283 = scalar_lea.sflag [#allocation3], %s282
        %s284 = sand.u32 %s33, 1
        %s285 = smul.addr %s284, 128
        %s286 = scalar_lea.vmem [#allocation2], %s285
        %p287 = pneg %p46
        %p288 = pneg %p43
        %s289 = sand.u32 %s25, 1
        %s290 = scalar_lea.sflag [#allocation6], %s289
        %s291 = sand.u32 %s59, 1
        %s292 = smul.addr %s291, 256
        %s293 = scalar_lea.vmem [#allocation5], %s292
        %p294 = pneg %p72
        %p295 = pneg %p69
        %s296 = smul.u32 2, %s25
        %p297 = scmp.lt.s32.totalorder %s296, 3
        %s298 = scalar_select %p297, %s296, 3
        %s299 = smul.addr %s298, 8
        %s300 = scalar_lea.vmem %s2, %s299
        %p301 = pneg %p98
        %p302 = pneg %p95
        %p303 = pneg %p119
        %p304 = pneg %p116
        %p305 = pneg %p140
        %p306 = pneg %p137
        %p307 = pneg %p166
        %p308 = pneg %p163
        %s309 = sand.u32 %s153, 1
        %s310 = scalar_lea.sflag [#allocation4], %s309
        %s311 = sand.u32 %s153, 1
        %s312 = smul.addr %s311, 16
        %s313 = scalar_lea.vmem [#allocation8], %s312
        %s314 = smul.u32 16, %s25
        %s315 = smul.u32 2, %s25
        %p316 = scmp.lt.s32.totalorder %s315, 3
        %s317 = scalar_select %p316, %s315, 3
        %s318 = smul.addr %s317, 8
        %s319 = scalar_lea.vmem %s2, %s318
        %s320 = smul.u32 2, %s25
        %s321 = smul.u32 2, %s25
        %v323 = vld [vmem:[%s264] sm:$0xf]
        %v324 = vld [vmem:[%s264 + $0x4] sm:$0xf]
        %v325 = vld [vmem:[%s264 + $0x8] sm:$0xf]
        %v326 = vld [vmem:[%s264 + $0xc] sm:$0xf]
        %v327 = vld [vmem:[%s264 + $0x10] sm:$0xf]
        %v328 = vld [vmem:[%s264 + $0x14] sm:$0xf]
        %v329 = vld [vmem:[%s264 + $0x18] sm:$0xf]
        %v330 = vld [vmem:[%s264 + $0x1c] sm:$0xf]
        %v331 = vld [vmem:[%s264 + $0x20] sm:$0xf]
        %v332 = vld [vmem:[%s264 + $0x24] sm:$0xf]
        %v333 = vld [vmem:[%s264 + $0x28] sm:$0xf]
        %v334 = vld [vmem:[%s264 + $0x2c] sm:$0xf]
        %v335 = vld [vmem:[%s264 + $0x30] sm:$0xf]
        %v336 = vld [vmem:[%s264 + $0x34] sm:$0xf]
        %v337 = vld [vmem:[%s264 + $0x38] sm:$0xf]
        %v338 = vld [vmem:[%s264 + $0x3c] sm:$0xf]
        %v339 = vld [vmem:[%s264 + $0x40] sm:$0xf]
        %v340 = vld [vmem:[%s264 + $0x44] sm:$0xf]
        %v341 = vld [vmem:[%s264 + $0x48] sm:$0xf]
        %v342 = vld [vmem:[%s264 + $0x4c] sm:$0xf]
        %v343 = vld [vmem:[%s264 + $0x50] sm:$0xf]
        %v344 = vld [vmem:[%s264 + $0x54] sm:$0xf]
        %v345 = vld [vmem:[%s264 + $0x58] sm:$0xf]
        %v346 = vld [vmem:[%s264 + $0x5c] sm:$0xf]
        %v347 = vld [vmem:[%s264 + $0x60] sm:$0xf]
        %v348 = vld [vmem:[%s264 + $0x64] sm:$0xf]
        %v349 = vld [vmem:[%s264 + $0x68] sm:$0xf]
        %v350 = vld [vmem:[%s264 + $0x6c] sm:$0xf]
        %v351 = vld [vmem:[%s264 + $0x70] sm:$0xf]
        %v352 = vld [vmem:[%s264 + $0x74] sm:$0xf]
        %v353 = vld [vmem:[%s264 + $0x78] sm:$0xf]
        %v354 = vld [vmem:[%s264 + $0x7c] sm:$0xf]
        %v355 = vld [vmem:[%s273] sm:$0xff]
        %v356 = vld [vmem:[%s273 + $0x8] sm:$0xff]
        %v357 = vld [vmem:[%s273 + $0x10] sm:$0xff]
        %v358 = vld [vmem:[%s273 + $0x18] sm:$0xff]
        %v359 = vld [vmem:[%s273 + $0x20] sm:$0xff]
        %v360 = vld [vmem:[%s273 + $0x28] sm:$0xff]
        %v361 = vld [vmem:[%s273 + $0x30] sm:$0xff]
        %v362 = vld [vmem:[%s273 + $0x38] sm:$0xff]
        %v363 = vld [vmem:[%s273 + $0x40] sm:$0xff]
        %v364 = vld [vmem:[%s273 + $0x48] sm:$0xff]
        %v365 = vld [vmem:[%s273 + $0x50] sm:$0xff]
        %v366 = vld [vmem:[%s273 + $0x58] sm:$0xff]
        %v367 = vld [vmem:[%s273 + $0x60] sm:$0xff]
        %v368 = vld [vmem:[%s273 + $0x68] sm:$0xff]
        %v369 = vld [vmem:[%s273 + $0x70] sm:$0xff]
        %v370 = vld [vmem:[%s273 + $0x78] sm:$0xff]
        %v371 = vld [vmem:[%s273 + $0x80] sm:$0xff]
        %v372 = vld [vmem:[%s273 + $0x88] sm:$0xff]
        %v373 = vld [vmem:[%s273 + $0x90] sm:$0xff]
        %v374 = vld [vmem:[%s273 + $0x98] sm:$0xff]
        %v375 = vld [vmem:[%s273 + $0xa0] sm:$0xff]
        %v376 = vld [vmem:[%s273 + $0xa8] sm:$0xff]
        %v377 = vld [vmem:[%s273 + $0xb0] sm:$0xff]
        %v378 = vld [vmem:[%s273 + $0xb8] sm:$0xff]
        %v379 = vld [vmem:[%s273 + $0xc0] sm:$0xff]
        %v380 = vld [vmem:[%s273 + $0xc8] sm:$0xff]
        %v381 = vld [vmem:[%s273 + $0xd0] sm:$0xff]
        %v382 = vld [vmem:[%s273 + $0xd8] sm:$0xff]
        %v383 = vld [vmem:[%s273 + $0xe0] sm:$0xff]
        %v384 = vld [vmem:[%s273 + $0xe8] sm:$0xff]
        %v385 = vld [vmem:[%s273 + $0xf0] sm:$0xff]
        %v386 = vld [vmem:[%s273 + $0xf8] sm:$0xff]
        %v387 = vld [vmem:[%s319] sm:$0xff]
        %v388 = vld [vmem:[%s319 + $0x8] sm:$0xff]
        %v389 = vld [vmem:[#allocation7] sm:$0xf]
        %v390 = vld [vmem:[#allocation7 + $0x4] sm:$0xf]
        %v391 = vld [vmem:[#allocation7 + $0x8] sm:$0xf]
        %v392 = vld [vmem:[#allocation7 + $0xc] sm:$0xf]
        %v393 = vld [vmem:[#allocation7 + $0x10] sm:$0xf]
        %v394 = vld [vmem:[#allocation7 + $0x14] sm:$0xf]
        %v395 = vld [vmem:[#allocation7 + $0x18] sm:$0xf]
        %v396 = vld [vmem:[#allocation7 + $0x1c] sm:$0xf]
        %v397 = vld [vmem:[#allocation7 + $0x20] sm:$0xf]
        %v398 = vld [vmem:[#allocation7 + $0x24] sm:$0xf]
        %v399 = vld [vmem:[#allocation7 + $0x28] sm:$0xf]
        %v400 = vld [vmem:[#allocation7 + $0x2c] sm:$0xf]
        %v401 = vld [vmem:[#allocation7 + $0x30] sm:$0xf]
        %v402 = vld [vmem:[#allocation7 + $0x34] sm:$0xf]
        %v403 = vld [vmem:[#allocation7 + $0x38] sm:$0xf]
        %v404 = vld [vmem:[#allocation7 + $0x3c] sm:$0xf]
        %s405 = scalar_lea.vmem [#allocation7], 64
        %v406 = vld [vmem:[%s405] sm:$0xf]
        %v407 = vld [vmem:[%s405 + $0x4] sm:$0xf]
        %v408 = vld [vmem:[%s405 + $0x8] sm:$0xf]
        %v409 = vld [vmem:[%s405 + $0xc] sm:$0xf]
        %v410 = vld [vmem:[%s405 + $0x10] sm:$0xf]
        %v411 = vld [vmem:[%s405 + $0x14] sm:$0xf]
        %v412 = vld [vmem:[%s405 + $0x18] sm:$0xf]
        %v413 = vld [vmem:[%s405 + $0x1c] sm:$0xf]
        %v414 = vld [vmem:[%s405 + $0x20] sm:$0xf]
        %v415 = vld [vmem:[%s405 + $0x24] sm:$0xf]
        %v416 = vld [vmem:[%s405 + $0x28] sm:$0xf]
        %v417 = vld [vmem:[%s405 + $0x2c] sm:$0xf]
        %v418 = vld [vmem:[%s405 + $0x30] sm:$0xf]
        %v419 = vld [vmem:[%s405 + $0x34] sm:$0xf]
        %v420 = vld [vmem:[%s405 + $0x38] sm:$0xf]
        %v421 = vld [vmem:[%s405 + $0x3c] sm:$0xf]
        %s422 = scalar_lea.vmem [#allocation7], 128
        %v423 = vld [vmem:[%s422] sm:$0xf]
        %v424 = vld [vmem:[%s422 + $0x4] sm:$0xf]
        %v425 = vld [vmem:[%s422 + $0x8] sm:$0xf]
        %v426 = vld [vmem:[%s422 + $0xc] sm:$0xf]
        %v427 = vld [vmem:[%s422 + $0x10] sm:$0xf]
        %v428 = vld [vmem:[%s422 + $0x14] sm:$0xf]
        %v429 = vld [vmem:[%s422 + $0x18] sm:$0xf]
        %v430 = vld [vmem:[%s422 + $0x1c] sm:$0xf]
        %v431 = vld [vmem:[%s422 + $0x20] sm:$0xf]
        %v432 = vld [vmem:[%s422 + $0x24] sm:$0xf]
        %v433 = vld [vmem:[%s422 + $0x28] sm:$0xf]
        %v434 = vld [vmem:[%s422 + $0x2c] sm:$0xf]
        %v435 = vld [vmem:[%s422 + $0x30] sm:$0xf]
        %v436 = vld [vmem:[%s422 + $0x34] sm:$0xf]
        %v437 = vld [vmem:[%s422 + $0x38] sm:$0xf]
        %v438 = vld [vmem:[%s422 + $0x3c] sm:$0xf]
        %s439 = scalar_lea.vmem [#allocation7], 192
        %v440 = vld [vmem:[%s439] sm:$0xf]
        %v441 = vld [vmem:[%s439 + $0x4] sm:$0xf]
        %v442 = vld [vmem:[%s439 + $0x8] sm:$0xf]
        %v443 = vld [vmem:[%s439 + $0xc] sm:$0xf]
        %v444 = vld [vmem:[%s439 + $0x10] sm:$0xf]
        %v445 = vld [vmem:[%s439 + $0x14] sm:$0xf]
        %v446 = vld [vmem:[%s439 + $0x18] sm:$0xf]
        %v447 = vld [vmem:[%s439 + $0x1c] sm:$0xf]
        %v448 = vld [vmem:[%s439 + $0x20] sm:$0xf]
        %v449 = vld [vmem:[%s439 + $0x24] sm:$0xf]
        %v450 = vld [vmem:[%s439 + $0x28] sm:$0xf]
        %v451 = vld [vmem:[%s439 + $0x2c] sm:$0xf]
        %v452 = vld [vmem:[%s439 + $0x30] sm:$0xf]
        %v453 = vld [vmem:[%s439 + $0x34] sm:$0xf]
        %v454 = vld [vmem:[%s439 + $0x38] sm:$0xf]
        %v455 = vld [vmem:[%s439 + $0x3c] sm:$0xf]
        %v456 = vld [vmem:[%s4] sm:$0x1]
        %v457 = vld [vmem:[%s4 + $0x1] sm:$0x1]
        %v458 = vld [vmem:[%s4 + $0x2] sm:$0x1]
        %v459 = vld [vmem:[%s4 + $0x3] sm:$0x1]
        %v460 = vld [vmem:[%s4 + $0x4] sm:$0x1]
        %v461 = vlaneseq
        %v462 = vshrl.u32 %v461, 7
        %v463 = vsub.s32 0, %v462
        %v464 = vrot.slane %v456, %v463
        %v497 = vunpack.c.l.b16 %v323
        %v498 = vunpack.c.l.b16 %v324
        %v499 = vunpack.c.l.b16 %v325
        %v500 = vunpack.c.l.b16 %v326
        %v501 = vunpack.c.l.b16 %v327
        %v502 = vunpack.c.l.b16 %v328
        %v503 = vunpack.c.l.b16 %v329
        %v504 = vunpack.c.l.b16 %v330
        %v505 = vunpack.c.l.b16 %v331
        %v506 = vunpack.c.l.b16 %v332
        %v507 = vunpack.c.l.b16 %v333
        %v508 = vunpack.c.l.b16 %v334
        %v509 = vunpack.c.l.b16 %v335
        %v510 = vunpack.c.l.b16 %v336
        %v511 = vunpack.c.l.b16 %v337
        %v512 = vunpack.c.l.b16 %v338
        %v513 = vunpack.c.l.b16 %v339
        %v514 = vunpack.c.l.b16 %v340
        %v515 = vunpack.c.l.b16 %v341
        %v516 = vunpack.c.l.b16 %v342
        %v517 = vunpack.c.l.b16 %v343
        %v518 = vunpack.c.l.b16 %v344
        %v519 = vunpack.c.l.b16 %v345
        %v520 = vunpack.c.l.b16 %v346
        %v521 = vunpack.c.l.b16 %v347
        %v522 = vunpack.c.l.b16 %v348
        %v523 = vunpack.c.l.b16 %v349
        %v524 = vunpack.c.l.b16 %v350
        %v525 = vunpack.c.l.b16 %v351
        %v526 = vunpack.c.l.b16 %v352
        %v527 = vunpack.c.l.b16 %v353
        %v528 = vunpack.c.l.b16 %v354
        %v529 = vpack.c.b16 %v498, %v497
        %v530 = vpack.c.b16 %v500, %v499
        %v531 = vpack.c.b16 %v502, %v501
        %v532 = vpack.c.b16 %v504, %v503
        %v533 = vpack.c.b16 %v506, %v505
        %v534 = vpack.c.b16 %v508, %v507
        %v535 = vpack.c.b16 %v510, %v509
        %v536 = vpack.c.b16 %v512, %v511
        %v537 = vpack.c.b16 %v514, %v513
        %v538 = vpack.c.b16 %v516, %v515
        %v539 = vpack.c.b16 %v518, %v517
        %v540 = vpack.c.b16 %v520, %v519
        %v541 = vpack.c.b16 %v522, %v521
        %v542 = vpack.c.b16 %v524, %v523
        %v543 = vpack.c.b16 %v526, %v525
        %v544 = vpack.c.b16 %v528, %v527
        %v577 = vunpack.c.l.b16 %v389
        %v578 = vunpack.c.l.b16 %v390
        %v579 = vunpack.c.l.b16 %v391
        %v580 = vunpack.c.l.b16 %v392
        %v581 = vunpack.c.l.b16 %v393
        %v582 = vunpack.c.l.b16 %v394
        %v583 = vunpack.c.l.b16 %v395
        %v584 = vunpack.c.l.b16 %v396
        %v585 = vunpack.c.l.b16 %v397
        %v586 = vunpack.c.l.b16 %v398
        %v587 = vunpack.c.l.b16 %v399
        %v588 = vunpack.c.l.b16 %v400
        %v589 = vunpack.c.l.b16 %v401
        %v590 = vunpack.c.l.b16 %v402
        %v591 = vunpack.c.l.b16 %v403
        %v592 = vunpack.c.l.b16 %v404
        %v593 = vpack.c.b16 %v578, %v577
        %v594 = vpack.c.b16 %v580, %v579
        %v595 = vpack.c.b16 %v582, %v581
        %v596 = vpack.c.b16 %v584, %v583
        %v597 = vpack.c.b16 %v586, %v585
        %v598 = vpack.c.b16 %v588, %v587
        %v599 = vpack.c.b16 %v590, %v589
        %v600 = vpack.c.b16 %v592, %v591
        %609 = vmatprep.subr.bf16.mxu0 0
        %610 = vmatpush1.bf16.msra.mxu0 %v593
        %611 = vmatprep.subr.bf16.mxu0 0
        %612 = vmatpush1.bf16.msra.mxu0 %v594
        %613 = vmatprep.subr.bf16.mxu0 0
        %614 = vmatpush1.bf16.msra.mxu0 %v595
        %615 = vmatprep.subr.bf16.mxu0 0
        %616 = vmatpush1.bf16.msra.mxu0 %v596
        %617 = vmatprep.subr.bf16.mxu0 0
        %618 = vmatpush1.bf16.msra.mxu0 %v597
        %619 = vmatprep.subr.bf16.mxu0 0
        %620 = vmatpush1.bf16.msra.mxu0 %v598
        %621 = vmatprep.subr.bf16.mxu0 0
        %622 = vmatpush1.bf16.msra.mxu0 %v599
        %623 = vmatprep.subr.bf16.mxu0 0
        %624 = vmatpush1.bf16.msra.mxu0 %v600
        %625 = vmatprep.subr.bf16.mxu0 0
        %626 = vmatpush1.bf16.msra.mxu0 0
        %627 = vmatprep.subr.bf16.mxu0 0
        %628 = vmatpush1.bf16.msra.mxu0 0
        %629 = vmatprep.subr.bf16.mxu0 0
        %630 = vmatpush1.bf16.msra.mxu0 0
        %631 = vmatprep.subr.bf16.mxu0 0
        %632 = vmatpush1.bf16.msra.mxu0 0
        %633 = vmatprep.subr.bf16.mxu0 0
        %634 = vmatpush1.bf16.msra.mxu0 0
        %635 = vmatprep.subr.bf16.mxu0 0
        %636 = vmatpush1.bf16.msra.mxu0 0
        %637 = vmatprep.subr.bf16.mxu0 0
        %638 = vmatpush1.bf16.msra.mxu0 0
        %639 = vmatprep.subr.bf16.mxu0 0
        %640 = vmatpush1.bf16.msra.mxu0 0
        %641 = vmatprep.mubr.bf16.mxu0 0
        %642 = vmatmul.mubr.bf16.gmra.mrb[0].mxu0 %v529
        %v643 = vpop.f32.mrb[0].mxu0
        %v644 = vadd.f32 %v464, %v643
        %v645 = vpop.f32.mrb[0].mxu0
        %v646 = vpop.f32.mrb[0].mxu0
        %v647 = vadd.f32 %v464, %v646
        %v648 = vpop.f32.mrb[0].mxu0
        %649 = vmatprep.mubr.bf16.mxu0 0
        %650 = vmatmul.mubr.bf16.gmra.mrb[0].mxu0 %v530
        %v651 = vpop.f32.mrb[0].mxu0
        %v652 = vadd.f32 %v464, %v651
        %v653 = vpop.f32.mrb[0].mxu0
        %v654 = vpop.f32.mrb[0].mxu0
        %v655 = vadd.f32 %v464, %v654
        %v656 = vpop.f32.mrb[0].mxu0
        %657 = vmatprep.mubr.bf16.mxu0 0
        %658 = vmatmul.mubr.bf16.gmra.mrb[0].mxu0 %v531
        %v659 = vpop.f32.mrb[0].mxu0
        %v660 = vadd.f32 %v464, %v659
        %v661 = vpop.f32.mrb[0].mxu0
        %v662 = vpop.f32.mrb[0].mxu0
        %v663 = vadd.f32 %v464, %v662
        %v664 = vpop.f32.mrb[0].mxu0
        %665 = vmatprep.mubr.bf16.mxu0 0
        %666 = vmatmul.mubr.bf16.gmra.mrb[0].mxu0 %v532
        %v667 = vpop.f32.mrb[0].mxu0
        %v668 = vadd.f32 %v464, %v667
        %v669 = vpop.f32.mrb[0].mxu0
        %v670 = vpop.f32.mrb[0].mxu0
        %v671 = vadd.f32 %v464, %v670
        %v672 = vpop.f32.mrb[0].mxu0
        %673 = vmatprep.mubr.bf16.mxu0 0
        %674 = vmatmul.mubr.bf16.gmra.mrb[0].mxu0 %v533
        %v675 = vpop.f32.mrb[0].mxu0
        %v676 = vadd.f32 %v464, %v675
        %v677 = vpop.f32.mrb[0].mxu0
        %v678 = vpop.f32.mrb[0].mxu0
        %v679 = vadd.f32 %v464, %v678
        %v680 = vpop.f32.mrb[0].mxu0
        %681 = vmatprep.mubr.bf16.mxu0 0
        %682 = vmatmul.mubr.bf16.gmra.mrb[0].mxu0 %v534
        %v683 = vpop.f32.mrb[0].mxu0
        %v684 = vadd.f32 %v464, %v683
        %v685 = vpop.f32.mrb[0].mxu0
        %v686 = vpop.f32.mrb[0].mxu0
        %v687 = vadd.f32 %v464, %v686
        %v688 = vpop.f32.mrb[0].mxu0
        %689 = vmatprep.mubr.bf16.mxu0 0
        %690 = vmatmul.mubr.bf16.gmra.mrb[0].mxu0 %v535
        %v691 = vpop.f32.mrb[0].mxu0
        %v692 = vadd.f32 %v464, %v691
        %v693 = vpop.f32.mrb[0].mxu0
        %v694 = vpop.f32.mrb[0].mxu0
        %v695 = vadd.f32 %v464, %v694
        %v696 = vpop.f32.mrb[0].mxu0
        %697 = vmatprep.mubr.bf16.mxu0 0
        %698 = vmatmul.mubr.bf16.gmra.mrb[0].mxu0 %v536
        %v699 = vpop.f32.mrb[0].mxu0
        %v700 = vadd.f32 %v464, %v699
        %v701 = vpop.f32.mrb[0].mxu0
        %v702 = vpop.f32.mrb[0].mxu0
        %v703 = vadd.f32 %v464, %v702
        %v704 = vpop.f32.mrb[0].mxu0
        %705 = vmatprep.mubr.bf16.mxu0 0
        %706 = vmatmul.mubr.bf16.gmra.mrb[0].mxu0 %v537
        %v707 = vpop.f32.mrb[0].mxu0
        %v708 = vadd.f32 %v464, %v707
        %v709 = vpop.f32.mrb[0].mxu0
        %v710 = vpop.f32.mrb[0].mxu0
        %v711 = vadd.f32 %v464, %v710
        %v712 = vpop.f32.mrb[0].mxu0
        %713 = vmatprep.mubr.bf16.mxu0 0
        %714 = vmatmul.mubr.bf16.gmra.mrb[0].mxu0 %v538
        %v715 = vpop.f32.mrb[0].mxu0
        %v716 = vadd.f32 %v464, %v715
        %v717 = vpop.f32.mrb[0].mxu0
        %v718 = vpop.f32.mrb[0].mxu0
        %v719 = vadd.f32 %v464, %v718
        %v720 = vpop.f32.mrb[0].mxu0
        %721 = vmatprep.mubr.bf16.mxu0 0
        %722 = vmatmul.mubr.bf16.gmra.mrb[0].mxu0 %v539
        %v723 = vpop.f32.mrb[0].mxu0
        %v724 = vadd.f32 %v464, %v723
        %v725 = vpop.f32.mrb[0].mxu0
        %v726 = vpop.f32.mrb[0].mxu0
        %v727 = vadd.f32 %v464, %v726
        %v728 = vpop.f32.mrb[0].mxu0
        %729 = vmatprep.mubr.bf16.mxu0 0
        %730 = vmatmul.mubr.bf16.gmra.mrb[0].mxu0 %v540
        %v731 = vpop.f32.mrb[0].mxu0
        %v732 = vadd.f32 %v464, %v731
        %v733 = vpop.f32.mrb[0].mxu0
        %v734 = vpop.f32.mrb[0].mxu0
        %v735 = vadd.f32 %v464, %v734
        %v736 = vpop.f32.mrb[0].mxu0
        %737 = vmatprep.mubr.bf16.mxu0 0
        %738 = vmatmul.mubr.bf16.gmra.mrb[0].mxu0 %v541
        %v739 = vpop.f32.mrb[0].mxu0
        %v740 = vadd.f32 %v464, %v739
        %v741 = vpop.f32.mrb[0].mxu0
        %v742 = vpop.f32.mrb[0].mxu0
        %v743 = vadd.f32 %v464, %v742
        %v744 = vpop.f32.mrb[0].mxu0
        %745 = vmatprep.mubr.bf16.mxu0 0
        %746 = vmatmul.mubr.bf16.gmra.mrb[0].mxu0 %v542
        %v747 = vpop.f32.mrb[0].mxu0
        %v748 = vadd.f32 %v464, %v747
        %v749 = vpop.f32.mrb[0].mxu0
        %v750 = vpop.f32.mrb[0].mxu0
        %v751 = vadd.f32 %v464, %v750
        %v752 = vpop.f32.mrb[0].mxu0
        %753 = vmatprep.mubr.bf16.mxu0 0
        %754 = vmatmul.mubr.bf16.gmra.mrb[0].mxu0 %v543
        %v755 = vpop.f32.mrb[0].mxu0
        %v756 = vadd.f32 %v464, %v755
        %v757 = vpop.f32.mrb[0].mxu0
        %v758 = vpop.f32.mrb[0].mxu0
        %v759 = vadd.f32 %v464, %v758
        %v760 = vpop.f32.mrb[0].mxu0
        %761 = vmatprep.mubr.bf16.mxu0 0
        %762 = vmatmul.mubr.bf16.gmra.mrb[0].mxu0 %v544
        %v763 = vpop.f32.mrb[0].mxu0
        %v764 = vadd.f32 %v464, %v763
        %v765 = vpop.f32.mrb[0].mxu0
        %v766 = vpop.f32.mrb[0].mxu0
        %v767 = vadd.f32 %v464, %v766
        %v768 = vpop.f32.mrb[0].mxu0
        %769 = vdwg.mxu0
        %vm770 = vcmp.gt.f32.partialorder %v644, 0.0
        %vm771 = vcmp.gt.f32.partialorder %v647, 0.0
        %vm772 = vcmp.gt.f32.partialorder %v652, 0.0
        %vm773 = vcmp.gt.f32.partialorder %v655, 0.0
        %vm774 = vcmp.gt.f32.partialorder %v660, 0.0
        %vm775 = vcmp.gt.f32.partialorder %v663, 0.0
        %vm776 = vcmp.gt.f32.partialorder %v668, 0.0
        %vm777 = vcmp.gt.f32.partialorder %v671, 0.0
        %vm778 = vcmp.gt.f32.partialorder %v676, 0.0
        %vm779 = vcmp.gt.f32.partialorder %v679, 0.0
        %vm780 = vcmp.gt.f32.partialorder %v684, 0.0
        %vm781 = vcmp.gt.f32.partialorder %v687, 0.0
        %vm782 = vcmp.gt.f32.partialorder %v692, 0.0
        %vm783 = vcmp.gt.f32.partialorder %v695, 0.0
        %vm784 = vcmp.gt.f32.partialorder %v700, 0.0
        %vm785 = vcmp.gt.f32.partialorder %v703, 0.0
        %vm786 = vcmp.gt.f32.partialorder %v708, 0.0
        %vm787 = vcmp.gt.f32.partialorder %v711, 0.0
        %vm788 = vcmp.gt.f32.partialorder %v716, 0.0
        %vm789 = vcmp.gt.f32.partialorder %v719, 0.0
        %vm790 = vcmp.gt.f32.partialorder %v724, 0.0
        %vm791 = vcmp.gt.f32.partialorder %v727, 0.0
        %vm792 = vcmp.gt.f32.partialorder %v732, 0.0
        %vm793 = vcmp.gt.f32.partialorder %v735, 0.0
        %vm794 = vcmp.gt.f32.partialorder %v740, 0.0
        %vm795 = vcmp.gt.f32.partialorder %v743, 0.0
        %vm796 = vcmp.gt.f32.partialorder %v748, 0.0
        %vm797 = vcmp.gt.f32.partialorder %v751, 0.0
        %vm798 = vcmp.gt.f32.partialorder %v756, 0.0
        %vm799 = vcmp.gt.f32.partialorder %v759, 0.0
        %vm800 = vcmp.gt.f32.partialorder %v764, 0.0
        %vm801 = vcmp.gt.f32.partialorder %v767, 0.0
        %v802 = vmul.f32 %v644, 0.01
        %v803 = vmul.f32 %v647, 0.01
        %v804 = vmul.f32 %v652, 0.01
        %v805 = vmul.f32 %v655, 0.01
        %v806 = vmul.f32 %v660, 0.01
        %v807 = vmul.f32 %v663, 0.01
        %v808 = vmul.f32 %v668, 0.01
        %v809 = vmul.f32 %v671, 0.01
        %v810 = vmul.f32 %v676, 0.01
        %v811 = vmul.f32 %v679, 0.01
        %v812 = vmul.f32 %v684, 0.01
        %v813 = vmul.f32 %v687, 0.01
        %v814 = vmul.f32 %v692, 0.01
        %v815 = vmul.f32 %v695, 0.01
        %v816 = vmul.f32 %v700, 0.01
        %v817 = vmul.f32 %v703, 0.01
        %v818 = vmul.f32 %v708, 0.01
        %v819 = vmul.f32 %v711, 0.01
        %v820 = vmul.f32 %v716, 0.01
        %v821 = vmul.f32 %v719, 0.01
        %v822 = vmul.f32 %v724, 0.01
        %v823 = vmul.f32 %v727, 0.01
        %v824 = vmul.f32 %v732, 0.01
        %v825 = vmul.f32 %v735, 0.01
        %v826 = vmul.f32 %v740, 0.01
        %v827 = vmul.f32 %v743, 0.01
        %v828 = vmul.f32 %v748, 0.01
        %v829 = vmul.f32 %v751, 0.01
        %v830 = vmul.f32 %v756, 0.01
        %v831 = vmul.f32 %v759, 0.01
        %v832 = vmul.f32 %v764, 0.01
        %v833 = vmul.f32 %v767, 0.01
        %v834 = vsel %vm770, %v644, %v802
        %v835 = vsel %vm771, %v647, %v803
        %v836 = vsel %vm772, %v652, %v804
        %v837 = vsel %vm773, %v655, %v805
        %v838 = vsel %vm774, %v660, %v806
        %v839 = vsel %vm775, %v663, %v807
        %v840 = vsel %vm776, %v668, %v808
        %v841 = vsel %vm777, %v671, %v809
        %v842 = vsel %vm778, %v676, %v810
        %v843 = vsel %vm779, %v679, %v811
        %v844 = vsel %vm780, %v684, %v812
        %v845 = vsel %vm781, %v687, %v813
        %v846 = vsel %vm782, %v692, %v814
        %v847 = vsel %vm783, %v695, %v815
        %v848 = vsel %vm784, %v700, %v816
        %v849 = vsel %vm785, %v703, %v817
        %v850 = vsel %vm786, %v708, %v818
        %v851 = vsel %vm787, %v711, %v819
        %v852 = vsel %vm788, %v716, %v820
        %v853 = vsel %vm789, %v719, %v821
        %v854 = vsel %vm790, %v724, %v822
        %v855 = vsel %vm791, %v727, %v823
        %v856 = vsel %vm792, %v732, %v824
        %v857 = vsel %vm793, %v735, %v825
        %v858 = vsel %vm794, %v740, %v826
        %v859 = vsel %vm795, %v743, %v827
        %v860 = vsel %vm796, %v748, %v828
        %v861 = vsel %vm797, %v751, %v829
        %v862 = vsel %vm798, %v756, %v830
        %v863 = vsel %vm799, %v759, %v831
        %v864 = vsel %vm800, %v764, %v832
        %v865 = vsel %vm801, %v767, %v833
        %v866 = vpack.c.bf16 %v835, %v834
        %v867 = vpack.c.bf16 %v837, %v836
        %v868 = vpack.c.bf16 %v839, %v838
        %v869 = vpack.c.bf16 %v841, %v840
        %v870 = vpack.c.bf16 %v843, %v842
        %v871 = vpack.c.bf16 %v845, %v844
        %v872 = vpack.c.bf16 %v847, %v846
        %v873 = vpack.c.bf16 %v849, %v848
        %v874 = vpack.c.bf16 %v851, %v850
        %v875 = vpack.c.bf16 %v853, %v852
        %v876 = vpack.c.bf16 %v855, %v854
        %v877 = vpack.c.bf16 %v857, %v856
        %v878 = vpack.c.bf16 %v859, %v858
        %v879 = vpack.c.bf16 %v861, %v860
        %v880 = vpack.c.bf16 %v863, %v862
        %v881 = vpack.c.bf16 %v865, %v864
        %v882 = vlaneseq
        %v883 = vshrl.u32 %v882, 7
        %v884 = vsub.s32 0, %v883
        %v885 = vrot.slane %v457, %v884
        %v902 = vunpack.c.l.b16 %v406
        %v903 = vunpack.c.l.b16 %v407
        %v904 = vunpack.c.l.b16 %v408
        %v905 = vunpack.c.l.b16 %v409
        %v906 = vunpack.c.l.b16 %v410
        %v907 = vunpack.c.l.b16 %v411
        %v908 = vunpack.c.l.b16 %v412
        %v909 = vunpack.c.l.b16 %v413
        %v910 = vunpack.c.l.b16 %v414
        %v911 = vunpack.c.l.b16 %v415
        %v912 = vunpack.c.l.b16 %v416
        %v913 = vunpack.c.l.b16 %v417
        %v914 = vunpack.c.l.b16 %v418
        %v915 = vunpack.c.l.b16 %v419
        %v916 = vunpack.c.l.b16 %v420
        %v917 = vunpack.c.l.b16 %v421
        %v918 = vpack.c.b16 %v903, %v902
        %v919 = vpack.c.b16 %v905, %v904
        %v920 = vpack.c.b16 %v907, %v906
        %v921 = vpack.c.b16 %v909, %v908
        %v922 = vpack.c.b16 %v911, %v910
        %v923 = vpack.c.b16 %v913, %v912
        %v924 = vpack.c.b16 %v915, %v914
        %v925 = vpack.c.b16 %v917, %v916
        %934 = vmatprep.subr.bf16.mxu0 0
        %935 = vmatpush1.bf16.msra.mxu0 %v918
        %936 = vmatprep.subr.bf16.mxu0 0
        %937 = vmatpush1.bf16.msra.mxu0 %v919
        %938 = vmatprep.subr.bf16.mxu0 0
        %939 = vmatpush1.bf16.msra.mxu0 %v920
        %940 = vmatprep.subr.bf16.mxu0 0
        %941 = vmatpush1.bf16.msra.mxu0 %v921
        %942 = vmatprep.subr.bf16.mxu0 0
        %943 = vmatpush1.bf16.msra.mxu0 %v922
        %944 = vmatprep.subr.bf16.mxu0 0
        %945 = vmatpush1.bf16.msra.mxu0 %v923
        %946 = vmatprep.subr.bf16.mxu0 0
        %947 = vmatpush1.bf16.msra.mxu0 %v924
        %948 = vmatprep.subr.bf16.mxu0 0
        %949 = vmatpush1.bf16.msra.mxu0 %v925
        %950 = vmatprep.subr.bf16.mxu0 0
        %951 = vmatpush1.bf16.msra.mxu0 0
        %952 = vmatprep.subr.bf16.mxu0 0
        %953 = vmatpush1.bf16.msra.mxu0 0
        %954 = vmatprep.subr.bf16.mxu0 0
        %955 = vmatpush1.bf16.msra.mxu0 0
        %956 = vmatprep.subr.bf16.mxu0 0
        %957 = vmatpush1.bf16.msra.mxu0 0
        %958 = vmatprep.subr.bf16.mxu0 0
        %959 = vmatpush1.bf16.msra.mxu0 0
        %960 = vmatprep.subr.bf16.mxu0 0
        %961 = vmatpush1.bf16.msra.mxu0 0
        %962 = vmatprep.subr.bf16.mxu0 0
        %963 = vmatpush1.bf16.msra.mxu0 0
        %964 = vmatprep.subr.bf16.mxu0 0
        %965 = vmatpush1.bf16.msra.mxu0 0
        %966 = vmatprep.mubr.bf16.mxu0 0
        %967 = vmatmul.mubr.bf16.gmra.mrb[0].mxu0 %v866
        %v968 = vpop.f32.mrb[0].mxu0
        %v969 = vadd.f32 %v885, %v968
        %v970 = vpop.f32.mrb[0].mxu0
        %v971 = vpop.f32.mrb[0].mxu0
        %v972 = vadd.f32 %v885, %v971
        %v973 = vpop.f32.mrb[0].mxu0
        %974 = vmatprep.mubr.bf16.mxu0 0
        %975 = vmatmul.mubr.bf16.gmra.mrb[0].mxu0 %v867
        %v976 = vpop.f32.mrb[0].mxu0
        %v977 = vadd.f32 %v885, %v976
        %v978 = vpop.f32.mrb[0].mxu0
        %v979 = vpop.f32.mrb[0].mxu0
        %v980 = vadd.f32 %v885, %v979
        %v981 = vpop.f32.mrb[0].mxu0
        %982 = vmatprep.mubr.bf16.mxu0 0
        %983 = vmatmul.mubr.bf16.gmra.mrb[0].mxu0 %v868
        %v984 = vpop.f32.mrb[0].mxu0
        %v985 = vadd.f32 %v885, %v984
        %v986 = vpop.f32.mrb[0].mxu0
        %v987 = vpop.f32.mrb[0].mxu0
        %v988 = vadd.f32 %v885, %v987
        %v989 = vpop.f32.mrb[0].mxu0
        %990 = vmatprep.mubr.bf16.mxu0 0
        %991 = vmatmul.mubr.bf16.gmra.mrb[0].mxu0 %v869
        %v992 = vpop.f32.mrb[0].mxu0
        %v993 = vadd.f32 %v885, %v992
        %v994 = vpop.f32.mrb[0].mxu0
        %v995 = vpop.f32.mrb[0].mxu0
        %v996 = vadd.f32 %v885, %v995
        %v997 = vpop.f32.mrb[0].mxu0
        %998 = vmatprep.mubr.bf16.mxu0 0
        %999 = vmatmul.mubr.bf16.gmra.mrb[0].mxu0 %v870
        %v1000 = vpop.f32.mrb[0].mxu0
        %v1001 = vadd.f32 %v885, %v1000
        %v1002 = vpop.f32.mrb[0].mxu0
        %v1003 = vpop.f32.mrb[0].mxu0
        %v1004 = vadd.f32 %v885, %v1003
        %v1005 = vpop.f32.mrb[0].mxu0
        %1006 = vmatprep.mubr.bf16.mxu0 0
        %1007 = vmatmul.mubr.bf16.gmra.mrb[0].mxu0 %v871
        %v1008 = vpop.f32.mrb[0].mxu0
        %v1009 = vadd.f32 %v885, %v1008
        %v1010 = vpop.f32.mrb[0].mxu0
        %v1011 = vpop.f32.mrb[0].mxu0
        %v1012 = vadd.f32 %v885, %v1011
        %v1013 = vpop.f32.mrb[0].mxu0
        %1014 = vmatprep.mubr.bf16.mxu0 0
        %1015 = vmatmul.mubr.bf16.gmra.mrb[0].mxu0 %v872
        %v1016 = vpop.f32.mrb[0].mxu0
        %v1017 = vadd.f32 %v885, %v1016
        %v1018 = vpop.f32.mrb[0].mxu0
        %v1019 = vpop.f32.mrb[0].mxu0
        %v1020 = vadd.f32 %v885, %v1019
        %v1021 = vpop.f32.mrb[0].mxu0
        %1022 = vmatprep.mubr.bf16.mxu0 0
        %1023 = vmatmul.mubr.bf16.gmra.mrb[0].mxu0 %v873
        %v1024 = vpop.f32.mrb[0].mxu0
        %v1025 = vadd.f32 %v885, %v1024
        %v1026 = vpop.f32.mrb[0].mxu0
        %v1027 = vpop.f32.mrb[0].mxu0
        %v1028 = vadd.f32 %v885, %v1027
        %v1029 = vpop.f32.mrb[0].mxu0
        %1030 = vmatprep.mubr.bf16.mxu0 0
        %1031 = vmatmul.mubr.bf16.gmra.mrb[0].mxu0 %v874
        %v1032 = vpop.f32.mrb[0].mxu0
        %v1033 = vadd.f32 %v885, %v1032
        %v1034 = vpop.f32.mrb[0].mxu0
        %v1035 = vpop.f32.mrb[0].mxu0
        %v1036 = vadd.f32 %v885, %v1035
        %v1037 = vpop.f32.mrb[0].mxu0
        %1038 = vmatprep.mubr.bf16.mxu0 0
        %1039 = vmatmul.mubr.bf16.gmra.mrb[0].mxu0 %v875
        %v1040 = vpop.f32.mrb[0].mxu0
        %v1041 = vadd.f32 %v885, %v1040
        %v1042 = vpop.f32.mrb[0].mxu0
        %v1043 = vpop.f32.mrb[0].mxu0
        %v1044 = vadd.f32 %v885, %v1043
        %v1045 = vpop.f32.mrb[0].mxu0
        %1046 = vmatprep.mubr.bf16.mxu0 0
        %1047 = vmatmul.mubr.bf16.gmra.mrb[0].mxu0 %v876
        %v1048 = vpop.f32.mrb[0].mxu0
        %v1049 = vadd.f32 %v885, %v1048
        %v1050 = vpop.f32.mrb[0].mxu0
        %v1051 = vpop.f32.mrb[0].mxu0
        %v1052 = vadd.f32 %v885, %v1051
        %v1053 = vpop.f32.mrb[0].mxu0
        %1054 = vmatprep.mubr.bf16.mxu0 0
        %1055 = vmatmul.mubr.bf16.gmra.mrb[0].mxu0 %v877
        %v1056 = vpop.f32.mrb[0].mxu0
        %v1057 = vadd.f32 %v885, %v1056
        %v1058 = vpop.f32.mrb[0].mxu0
        %v1059 = vpop.f32.mrb[0].mxu0
        %v1060 = vadd.f32 %v885, %v1059
        %v1061 = vpop.f32.mrb[0].mxu0
        %1062 = vmatprep.mubr.bf16.mxu0 0
        %1063 = vmatmul.mubr.bf16.gmra.mrb[0].mxu0 %v878
        %v1064 = vpop.f32.mrb[0].mxu0
        %v1065 = vadd.f32 %v885, %v1064
        %v1066 = vpop.f32.mrb[0].mxu0
        %v1067 = vpop.f32.mrb[0].mxu0
        %v1068 = vadd.f32 %v885, %v1067
        %v1069 = vpop.f32.mrb[0].mxu0
        %1070 = vmatprep.mubr.bf16.mxu0 0
        %1071 = vmatmul.mubr.bf16.gmra.mrb[0].mxu0 %v879
        %v1072 = vpop.f32.mrb[0].mxu0
        %v1073 = vadd.f32 %v885, %v1072
        %v1074 = vpop.f32.mrb[0].mxu0
        %v1075 = vpop.f32.mrb[0].mxu0
        %v1076 = vadd.f32 %v885, %v1075
        %v1077 = vpop.f32.mrb[0].mxu0
        %1078 = vmatprep.mubr.bf16.mxu0 0
        %1079 = vmatmul.mubr.bf16.gmra.mrb[0].mxu0 %v880
        %v1080 = vpop.f32.mrb[0].mxu0
        %v1081 = vadd.f32 %v885, %v1080
        %v1082 = vpop.f32.mrb[0].mxu0
        %v1083 = vpop.f32.mrb[0].mxu0
        %v1084 = vadd.f32 %v885, %v1083
        %v1085 = vpop.f32.mrb[0].mxu0
        %1086 = vmatprep.mubr.bf16.mxu0 0
        %1087 = vmatmul.mubr.bf16.gmra.mrb[0].mxu0 %v881
        %v1088 = vpop.f32.mrb[0].mxu0
        %v1089 = vadd.f32 %v885, %v1088
        %v1090 = vpop.f32.mrb[0].mxu0
        %v1091 = vpop.f32.mrb[0].mxu0
        %v1092 = vadd.f32 %v885, %v1091
        %v1093 = vpop.f32.mrb[0].mxu0
        %1094 = vdwg.mxu0
        %v1095 = vpack.c.bf16 %v972, %v969
        %v1096 = vpack.c.bf16 %v980, %v977
        %v1097 = vpack.c.bf16 %v988, %v985
        %v1098 = vpack.c.bf16 %v996, %v993
        %v1099 = vpack.c.bf16 %v1004, %v1001
        %v1100 = vpack.c.bf16 %v1012, %v1009
        %v1101 = vpack.c.bf16 %v1020, %v1017
        %v1102 = vpack.c.bf16 %v1028, %v1025
        %v1103 = vpack.c.bf16 %v1036, %v1033
        %v1104 = vpack.c.bf16 %v1044, %v1041
        %v1105 = vpack.c.bf16 %v1052, %v1049
        %v1106 = vpack.c.bf16 %v1060, %v1057
        %v1107 = vpack.c.bf16 %v1068, %v1065
        %v1108 = vpack.c.bf16 %v1076, %v1073
        %v1109 = vpack.c.bf16 %v1084, %v1081
        %v1110 = vpack.c.bf16 %v1092, %v1089
        %v1143 = vunpack.c.l.b16 %v355
        %v1144 = vunpack.c.h.b16 %v355
        %v1145 = vunpack.c.l.b16 %v356
        %v1146 = vunpack.c.h.b16 %v356
        %v1147 = vunpack.c.l.b16 %v357
        %v1148 = vunpack.c.h.b16 %v357
        %v1149 = vunpack.c.l.b16 %v358
        %v1150 = vunpack.c.h.b16 %v358
        %v1151 = vunpack.c.l.b16 %v359
        %v1152 = vunpack.c.h.b16 %v359
        %v1153 = vunpack.c.l.b16 %v360
        %v1154 = vunpack.c.h.b16 %v360
        %v1155 = vunpack.c.l.b16 %v361
        %v1156 = vunpack.c.h.b16 %v361
        %v1157 = vunpack.c.l.b16 %v362
        %v1158 = vunpack.c.h.b16 %v362
        %v1159 = vunpack.c.l.b16 %v363
        %v1160 = vunpack.c.h.b16 %v363
        %v1161 = vunpack.c.l.b16 %v364
        %v1162 = vunpack.c.h.b16 %v364
        %v1163 = vunpack.c.l.b16 %v365
        %v1164 = vunpack.c.h.b16 %v365
        %v1165 = vunpack.c.l.b16 %v366
        %v1166 = vunpack.c.h.b16 %v366
        %v1167 = vunpack.c.l.b16 %v367
        %v1168 = vunpack.c.h.b16 %v367
        %v1169 = vunpack.c.l.b16 %v368
        %v1170 = vunpack.c.h.b16 %v368
        %v1171 = vunpack.c.l.b16 %v369
        %v1172 = vunpack.c.h.b16 %v369
        %v1173 = vunpack.c.l.b16 %v370
        %v1174 = vunpack.c.h.b16 %v370
        %v1175 = vunpack.c.l.b16 %v371
        %v1176 = vunpack.c.h.b16 %v371
        %v1177 = vunpack.c.l.b16 %v372
        %v1178 = vunpack.c.h.b16 %v372
        %v1179 = vunpack.c.l.b16 %v373
        %v1180 = vunpack.c.h.b16 %v373
        %v1181 = vunpack.c.l.b16 %v374
        %v1182 = vunpack.c.h.b16 %v374
        %v1183 = vunpack.c.l.b16 %v375
        %v1184 = vunpack.c.h.b16 %v375
        %v1185 = vunpack.c.l.b16 %v376
        %v1186 = vunpack.c.h.b16 %v376
        %v1187 = vunpack.c.l.b16 %v377
        %v1188 = vunpack.c.h.b16 %v377
        %v1189 = vunpack.c.l.b16 %v378
        %v1190 = vunpack.c.h.b16 %v378
        %v1191 = vunpack.c.l.b16 %v379
        %v1192 = vunpack.c.h.b16 %v379
        %v1193 = vunpack.c.l.b16 %v380
        %v1194 = vunpack.c.h.b16 %v380
        %v1195 = vunpack.c.l.b16 %v381
        %v1196 = vunpack.c.h.b16 %v381
        %v1197 = vunpack.c.l.b16 %v382
        %v1198 = vunpack.c.h.b16 %v382
        %v1199 = vunpack.c.l.b16 %v383
        %v1200 = vunpack.c.h.b16 %v383
        %v1201 = vunpack.c.l.b16 %v384
        %v1202 = vunpack.c.h.b16 %v384
        %v1203 = vunpack.c.l.b16 %v385
        %v1204 = vunpack.c.h.b16 %v385
        %v1205 = vunpack.c.l.b16 %v386
        %v1206 = vunpack.c.h.b16 %v386
        %v1207 = vpack.c.b16 %v1145, %v1143
        %v1208 = vpack.c.b16 %v1146, %v1144
        %v1209 = vpack.c.b16 %v1149, %v1147
        %v1210 = vpack.c.b16 %v1150, %v1148
        %v1211 = vpack.c.b16 %v1153, %v1151
        %v1212 = vpack.c.b16 %v1154, %v1152
        %v1213 = vpack.c.b16 %v1157, %v1155
        %v1214 = vpack.c.b16 %v1158, %v1156
        %v1215 = vpack.c.b16 %v1161, %v1159
        %v1216 = vpack.c.b16 %v1162, %v1160
        %v1217 = vpack.c.b16 %v1165, %v1163
        %v1218 = vpack.c.b16 %v1166, %v1164
        %v1219 = vpack.c.b16 %v1169, %v1167
        %v1220 = vpack.c.b16 %v1170, %v1168
        %v1221 = vpack.c.b16 %v1173, %v1171
        %v1222 = vpack.c.b16 %v1174, %v1172
        %v1223 = vpack.c.b16 %v1177, %v1175
        %v1224 = vpack.c.b16 %v1178, %v1176
        %v1225 = vpack.c.b16 %v1181, %v1179
        %v1226 = vpack.c.b16 %v1182, %v1180
        %v1227 = vpack.c.b16 %v1185, %v1183
        %v1228 = vpack.c.b16 %v1186, %v1184
        %v1229 = vpack.c.b16 %v1189, %v1187
        %v1230 = vpack.c.b16 %v1190, %v1188
        %v1231 = vpack.c.b16 %v1193, %v1191
        %v1232 = vpack.c.b16 %v1194, %v1192
        %v1233 = vpack.c.b16 %v1197, %v1195
        %v1234 = vpack.c.b16 %v1198, %v1196
        %v1235 = vpack.c.b16 %v1201, %v1199
        %v1236 = vpack.c.b16 %v1202, %v1200
        %v1237 = vpack.c.b16 %v1205, %v1203
        %v1238 = vpack.c.b16 %v1206, %v1204
        %1271 = vmatprep.subr.bf16.mxu0 0
        %1272 = vmatpush1.bf16.msra.mxu0 %v1095
        %1273 = vmatprep.subr.bf16.mxu0 0
        %1274 = vmatpush1.bf16.msra.mxu0 %v1096
        %1275 = vmatprep.subr.bf16.mxu0 0
        %1276 = vmatpush1.bf16.msra.mxu0 %v1097
        %1277 = vmatprep.subr.bf16.mxu0 0
        %1278 = vmatpush1.bf16.msra.mxu0 %v1098
        %1279 = vmatprep.subr.bf16.mxu0 0
        %1280 = vmatpush1.bf16.msra.mxu0 %v1099
        %1281 = vmatprep.subr.bf16.mxu0 0
        %1282 = vmatpush1.bf16.msra.mxu0 %v1100
        %1283 = vmatprep.subr.bf16.mxu0 0
        %1284 = vmatpush1.bf16.msra.mxu0 %v1101
        %1285 = vmatprep.subr.bf16.mxu0 0
        %1286 = vmatpush1.bf16.msra.mxu0 %v1102
        %1287 = vmatprep.subr.bf16.mxu0 0
        %1288 = vmatpush1.bf16.msra.mxu0 %v1103
        %1289 = vmatprep.subr.bf16.mxu0 0
        %1290 = vmatpush1.bf16.msra.mxu0 %v1104
        %1291 = vmatprep.subr.bf16.mxu0 0
        %1292 = vmatpush1.bf16.msra.mxu0 %v1105
        %1293 = vmatprep.subr.bf16.mxu0 0
        %1294 = vmatpush1.bf16.msra.mxu0 %v1106
        %1295 = vmatprep.subr.bf16.mxu0 0
        %1296 = vmatpush1.bf16.msra.mxu0 %v1107
        %1297 = vmatprep.subr.bf16.mxu0 0
        %1298 = vmatpush1.bf16.msra.mxu0 %v1108
        %1299 = vmatprep.subr.bf16.mxu0 0
        %1300 = vmatpush1.bf16.msra.mxu0 %v1109
        %1301 = vmatprep.subr.bf16.mxu0 0
        %1302 = vmatpush1.bf16.msra.mxu0 %v1110
        %1303 = vmatprep.mubr.bf16.mxu0 %v1208
        %1304 = vmatmul.mubr.bf16.gmra.mrb[0].mxu0 %v1207
        %v1305 = vpop.f32.mrb[0].mxu0
        %v1306 = vadd.f32 0.0, %v1305
        %v1307 = vpop.f32.mrb[0].mxu0
        %v1308 = vpop.f32.mrb[0].mxu0
        %v1309 = vadd.f32 0.0, %v1308
        %v1310 = vpop.f32.mrb[0].mxu0
        %1311 = vmatprep.mubr.bf16.mxu0 %v1210
        %1312 = vmatmul.mubr.bf16.gmra.mrb[0].mxu0 %v1209
        %v1313 = vpop.f32.mrb[0].mxu0
        %v1314 = vadd.f32 0.0, %v1313
        %v1315 = vpop.f32.mrb[0].mxu0
        %v1316 = vpop.f32.mrb[0].mxu0
        %v1317 = vadd.f32 0.0, %v1316
        %v1318 = vpop.f32.mrb[0].mxu0
        %1319 = vmatprep.mubr.bf16.mxu0 %v1212
        %1320 = vmatmul.mubr.bf16.gmra.mrb[0].mxu0 %v1211
        %v1321 = vpop.f32.mrb[0].mxu0
        %v1322 = vadd.f32 0.0, %v1321
        %v1323 = vpop.f32.mrb[0].mxu0
        %v1324 = vpop.f32.mrb[0].mxu0
        %v1325 = vadd.f32 0.0, %v1324
        %v1326 = vpop.f32.mrb[0].mxu0
        %1327 = vmatprep.mubr.bf16.mxu0 %v1214
        %1328 = vmatmul.mubr.bf16.gmra.mrb[0].mxu0 %v1213
        %v1329 = vpop.f32.mrb[0].mxu0
        %v1330 = vadd.f32 0.0, %v1329
        %v1331 = vpop.f32.mrb[0].mxu0
        %v1332 = vpop.f32.mrb[0].mxu0
        %v1333 = vadd.f32 0.0, %v1332
        %v1334 = vpop.f32.mrb[0].mxu0
        %1335 = vmatprep.mubr.bf16.mxu0 %v1216
        %1336 = vmatmul.mubr.bf16.gmra.mrb[0].mxu0 %v1215
        %v1337 = vpop.f32.mrb[0].mxu0
        %v1338 = vadd.f32 0.0, %v1337
        %v1339 = vpop.f32.mrb[0].mxu0
        %v1340 = vpop.f32.mrb[0].mxu0
        %v1341 = vadd.f32 0.0, %v1340
        %v1342 = vpop.f32.mrb[0].mxu0
        %1343 = vmatprep.mubr.bf16.mxu0 %v1218
        %1344 = vmatmul.mubr.bf16.gmra.mrb[0].mxu0 %v1217
        %v1345 = vpop.f32.mrb[0].mxu0
        %v1346 = vadd.f32 0.0, %v1345
        %v1347 = vpop.f32.mrb[0].mxu0
        %v1348 = vpop.f32.mrb[0].mxu0
        %v1349 = vadd.f32 0.0, %v1348
        %v1350 = vpop.f32.mrb[0].mxu0
        %1351 = vmatprep.mubr.bf16.mxu0 %v1220
        %1352 = vmatmul.mubr.bf16.gmra.mrb[0].mxu0 %v1219
        %v1353 = vpop.f32.mrb[0].mxu0
        %v1354 = vadd.f32 0.0, %v1353
        %v1355 = vpop.f32.mrb[0].mxu0
        %v1356 = vpop.f32.mrb[0].mxu0
        %v1357 = vadd.f32 0.0, %v1356
        %v1358 = vpop.f32.mrb[0].mxu0
        %1359 = vmatprep.mubr.bf16.mxu0 %v1222
        %1360 = vmatmul.mubr.bf16.gmra.mrb[0].mxu0 %v1221
        %v1361 = vpop.f32.mrb[0].mxu0
        %v1362 = vadd.f32 0.0, %v1361
        %v1363 = vpop.f32.mrb[0].mxu0
        %v1364 = vpop.f32.mrb[0].mxu0
        %v1365 = vadd.f32 0.0, %v1364
        %v1366 = vpop.f32.mrb[0].mxu0
        %1367 = vmatprep.mubr.bf16.mxu0 %v1224
        %1368 = vmatmul.mubr.bf16.gmra.mrb[0].mxu0 %v1223
        %v1369 = vpop.f32.mrb[0].mxu0
        %v1370 = vadd.f32 0.0, %v1369
        %v1371 = vpop.f32.mrb[0].mxu0
        %v1372 = vpop.f32.mrb[0].mxu0
        %v1373 = vadd.f32 0.0, %v1372
        %v1374 = vpop.f32.mrb[0].mxu0
        %1375 = vmatprep.mubr.bf16.mxu0 %v1226
        %1376 = vmatmul.mubr.bf16.gmra.mrb[0].mxu0 %v1225
        %v1377 = vpop.f32.mrb[0].mxu0
        %v1378 = vadd.f32 0.0, %v1377
        %v1379 = vpop.f32.mrb[0].mxu0
        %v1380 = vpop.f32.mrb[0].mxu0
        %v1381 = vadd.f32 0.0, %v1380
        %v1382 = vpop.f32.mrb[0].mxu0
        %1383 = vmatprep.mubr.bf16.mxu0 %v1228
        %1384 = vmatmul.mubr.bf16.gmra.mrb[0].mxu0 %v1227
        %v1385 = vpop.f32.mrb[0].mxu0
        %v1386 = vadd.f32 0.0, %v1385
        %v1387 = vpop.f32.mrb[0].mxu0
        %v1388 = vpop.f32.mrb[0].mxu0
        %v1389 = vadd.f32 0.0, %v1388
        %v1390 = vpop.f32.mrb[0].mxu0
        %1391 = vmatprep.mubr.bf16.mxu0 %v1230
        %1392 = vmatmul.mubr.bf16.gmra.mrb[0].mxu0 %v1229
        %v1393 = vpop.f32.mrb[0].mxu0
        %v1394 = vadd.f32 0.0, %v1393
        %v1395 = vpop.f32.mrb[0].mxu0
        %v1396 = vpop.f32.mrb[0].mxu0
        %v1397 = vadd.f32 0.0, %v1396
        %v1398 = vpop.f32.mrb[0].mxu0
        %1399 = vmatprep.mubr.bf16.mxu0 %v1232
        %1400 = vmatmul.mubr.bf16.gmra.mrb[0].mxu0 %v1231
        %v1401 = vpop.f32.mrb[0].mxu0
        %v1402 = vadd.f32 0.0, %v1401
        %v1403 = vpop.f32.mrb[0].mxu0
        %v1404 = vpop.f32.mrb[0].mxu0
        %v1405 = vadd.f32 0.0, %v1404
        %v1406 = vpop.f32.mrb[0].mxu0
        %1407 = vmatprep.mubr.bf16.mxu0 %v1234
        %1408 = vmatmul.mubr.bf16.gmra.mrb[0].mxu0 %v1233
        %v1409 = vpop.f32.mrb[0].mxu0
        %v1410 = vadd.f32 0.0, %v1409
        %v1411 = vpop.f32.mrb[0].mxu0
        %v1412 = vpop.f32.mrb[0].mxu0
        %v1413 = vadd.f32 0.0, %v1412
        %v1414 = vpop.f32.mrb[0].mxu0
        %1415 = vmatprep.mubr.bf16.mxu0 %v1236
        %1416 = vmatmul.mubr.bf16.gmra.mrb[0].mxu0 %v1235
        %v1417 = vpop.f32.mrb[0].mxu0
        %v1418 = vadd.f32 0.0, %v1417
        %v1419 = vpop.f32.mrb[0].mxu0
        %v1420 = vpop.f32.mrb[0].mxu0
        %v1421 = vadd.f32 0.0, %v1420
        %v1422 = vpop.f32.mrb[0].mxu0
        %1423 = vmatprep.mubr.bf16.mxu0 %v1238
        %1424 = vmatmul.mubr.bf16.gmra.mrb[0].mxu0 %v1237
        %v1425 = vpop.f32.mrb[0].mxu0
        %v1426 = vadd.f32 0.0, %v1425
        %v1427 = vpop.f32.mrb[0].mxu0
        %v1428 = vpop.f32.mrb[0].mxu0
        %v1429 = vadd.f32 0.0, %v1428
        %v1430 = vpop.f32.mrb[0].mxu0
        %1431 = vdwg.mxu0
        %v1432 = vadd.f32 %v834, %v1306
        %v1433 = vadd.f32 %v835, %v1309
        %v1434 = vadd.f32 %v836, %v1314
        %v1435 = vadd.f32 %v837, %v1317
        %v1436 = vadd.f32 %v838, %v1322
        %v1437 = vadd.f32 %v839, %v1325
        %v1438 = vadd.f32 %v840, %v1330
        %v1439 = vadd.f32 %v841, %v1333
        %v1440 = vadd.f32 %v842, %v1338
        %v1441 = vadd.f32 %v843, %v1341
        %v1442 = vadd.f32 %v844, %v1346
        %v1443 = vadd.f32 %v845, %v1349
        %v1444 = vadd.f32 %v846, %v1354
        %v1445 = vadd.f32 %v847, %v1357
        %v1446 = vadd.f32 %v848, %v1362
        %v1447 = vadd.f32 %v849, %v1365
        %v1448 = vadd.f32 %v850, %v1370
        %v1449 = vadd.f32 %v851, %v1373
        %v1450 = vadd.f32 %v852, %v1378
        %v1451 = vadd.f32 %v853, %v1381
        %v1452 = vadd.f32 %v854, %v1386
        %v1453 = vadd.f32 %v855, %v1389
        %v1454 = vadd.f32 %v856, %v1394
        %v1455 = vadd.f32 %v857, %v1397
        %v1456 = vadd.f32 %v858, %v1402
        %v1457 = vadd.f32 %v859, %v1405
        %v1458 = vadd.f32 %v860, %v1410
        %v1459 = vadd.f32 %v861, %v1413
        %v1460 = vadd.f32 %v862, %v1418
        %v1461 = vadd.f32 %v863, %v1421
        %v1462 = vadd.f32 %v864, %v1426
        %v1463 = vadd.f32 %v865, %v1429
        %v1464 = vmax.f32 %v1432, 0.0
        %v1465 = vmax.f32 %v1433, 0.0
        %v1466 = vmax.f32 %v1434, 0.0
        %v1467 = vmax.f32 %v1435, 0.0
        %v1468 = vmax.f32 %v1436, 0.0
        %v1469 = vmax.f32 %v1437, 0.0
        %v1470 = vmax.f32 %v1438, 0.0
        %v1471 = vmax.f32 %v1439, 0.0
        %v1472 = vmax.f32 %v1440, 0.0
        %v1473 = vmax.f32 %v1441, 0.0
        %v1474 = vmax.f32 %v1442, 0.0
        %v1475 = vmax.f32 %v1443, 0.0
        %v1476 = vmax.f32 %v1444, 0.0
        %v1477 = vmax.f32 %v1445, 0.0
        %v1478 = vmax.f32 %v1446, 0.0
        %v1479 = vmax.f32 %v1447, 0.0
        %v1480 = vmax.f32 %v1448, 0.0
        %v1481 = vmax.f32 %v1449, 0.0
        %v1482 = vmax.f32 %v1450, 0.0
        %v1483 = vmax.f32 %v1451, 0.0
        %v1484 = vmax.f32 %v1452, 0.0
        %v1485 = vmax.f32 %v1453, 0.0
        %v1486 = vmax.f32 %v1454, 0.0
        %v1487 = vmax.f32 %v1455, 0.0
        %v1488 = vmax.f32 %v1456, 0.0
        %v1489 = vmax.f32 %v1457, 0.0
        %v1490 = vmax.f32 %v1458, 0.0
        %v1491 = vmax.f32 %v1459, 0.0
        %v1492 = vmax.f32 %v1460, 0.0
        %v1493 = vmax.f32 %v1461, 0.0
        %v1494 = vmax.f32 %v1462, 0.0
        %v1495 = vmax.f32 %v1463, 0.0
        %v1496 = vlaneseq
        %v1497 = vshrl.u32 %v1496, 7
        %v1498 = vsub.s32 0, %v1497
        %v1499 = vrot.slane %v460, %v1498
        %v1500 = vmul.f32 %v1464, %v1499
        %v1501 = vmul.f32 %v1465, %v1499
        %v1502 = vmul.f32 %v1466, %v1499
        %v1503 = vmul.f32 %v1467, %v1499
        %v1504 = vmul.f32 %v1468, %v1499
        %v1505 = vmul.f32 %v1469, %v1499
        %v1506 = vmul.f32 %v1470, %v1499
        %v1507 = vmul.f32 %v1471, %v1499
        %v1508 = vmul.f32 %v1472, %v1499
        %v1509 = vmul.f32 %v1473, %v1499
        %v1510 = vmul.f32 %v1474, %v1499
        %v1511 = vmul.f32 %v1475, %v1499
        %v1512 = vmul.f32 %v1476, %v1499
        %v1513 = vmul.f32 %v1477, %v1499
        %v1514 = vmul.f32 %v1478, %v1499
        %v1515 = vmul.f32 %v1479, %v1499
        %v1516 = vmul.f32 %v1480, %v1499
        %v1517 = vmul.f32 %v1481, %v1499
        %v1518 = vmul.f32 %v1482, %v1499
        %v1519 = vmul.f32 %v1483, %v1499
        %v1520 = vmul.f32 %v1484, %v1499
        %v1521 = vmul.f32 %v1485, %v1499
        %v1522 = vmul.f32 %v1486, %v1499
        %v1523 = vmul.f32 %v1487, %v1499
        %v1524 = vmul.f32 %v1488, %v1499
        %v1525 = vmul.f32 %v1489, %v1499
        %v1526 = vmul.f32 %v1490, %v1499
        %v1527 = vmul.f32 %v1491, %v1499
        %v1528 = vmul.f32 %v1492, %v1499
        %v1529 = vmul.f32 %v1493, %v1499
        %v1530 = vmul.f32 %v1494, %v1499
        %v1531 = vmul.f32 %v1495, %v1499
        %1532 = vadd.xlane.f32.xlu0 %v1500
        %v1533 = vpop.xlane.xlu0 %1532
        %1534 = vadd.xlane.f32.xlu0 %v1501
        %v1535 = vpop.xlane.xlu0 %1534
        %1536 = vadd.xlane.f32.xlu0 %v1502
        %v1537 = vpop.xlane.xlu0 %1536
        %1538 = vadd.xlane.f32.xlu0 %v1503
        %v1539 = vpop.xlane.xlu0 %1538
        %1540 = vadd.xlane.f32.xlu0 %v1504
        %v1541 = vpop.xlane.xlu0 %1540
        %1542 = vadd.xlane.f32.xlu0 %v1505
        %v1543 = vpop.xlane.xlu0 %1542
        %1544 = vadd.xlane.f32.xlu0 %v1506
        %v1545 = vpop.xlane.xlu0 %1544
        %1546 = vadd.xlane.f32.xlu0 %v1507
        %v1547 = vpop.xlane.xlu0 %1546
        %1548 = vadd.xlane.f32.xlu0 %v1508
        %v1549 = vpop.xlane.xlu0 %1548
        %1550 = vadd.xlane.f32.xlu0 %v1509
        %v1551 = vpop.xlane.xlu0 %1550
        %1552 = vadd.xlane.f32.xlu0 %v1510
        %v1553 = vpop.xlane.xlu0 %1552
        %1554 = vadd.xlane.f32.xlu0 %v1511
        %v1555 = vpop.xlane.xlu0 %1554
        %1556 = vadd.xlane.f32.xlu0 %v1512
        %v1557 = vpop.xlane.xlu0 %1556
        %1558 = vadd.xlane.f32.xlu0 %v1513
        %v1559 = vpop.xlane.xlu0 %1558
        %1560 = vadd.xlane.f32.xlu0 %v1514
        %v1561 = vpop.xlane.xlu0 %1560
        %1562 = vadd.xlane.f32.xlu0 %v1515
        %v1563 = vpop.xlane.xlu0 %1562
        %1564 = vadd.xlane.f32.xlu0 %v1516
        %v1565 = vpop.xlane.xlu0 %1564
        %1566 = vadd.xlane.f32.xlu0 %v1517
        %v1567 = vpop.xlane.xlu0 %1566
        %1568 = vadd.xlane.f32.xlu0 %v1518
        %v1569 = vpop.xlane.xlu0 %1568
        %1570 = vadd.xlane.f32.xlu0 %v1519
        %v1571 = vpop.xlane.xlu0 %1570
        %1572 = vadd.xlane.f32.xlu0 %v1520
        %v1573 = vpop.xlane.xlu0 %1572
        %1574 = vadd.xlane.f32.xlu0 %v1521
        %v1575 = vpop.xlane.xlu0 %1574
        %1576 = vadd.xlane.f32.xlu0 %v1522
        %v1577 = vpop.xlane.xlu0 %1576
        %1578 = vadd.xlane.f32.xlu0 %v1523
        %v1579 = vpop.xlane.xlu0 %1578
        %1580 = vadd.xlane.f32.xlu0 %v1524
        %v1581 = vpop.xlane.xlu0 %1580
        %1582 = vadd.xlane.f32.xlu0 %v1525
        %v1583 = vpop.xlane.xlu0 %1582
        %1584 = vadd.xlane.f32.xlu0 %v1526
        %v1585 = vpop.xlane.xlu0 %1584
        %1586 = vadd.xlane.f32.xlu0 %v1527
        %v1587 = vpop.xlane.xlu0 %1586
        %1588 = vadd.xlane.f32.xlu0 %v1528
        %v1589 = vpop.xlane.xlu0 %1588
        %1590 = vadd.xlane.f32.xlu0 %v1529
        %v1591 = vpop.xlane.xlu0 %1590
        %1592 = vadd.xlane.f32.xlu0 %v1530
        %v1593 = vpop.xlane.xlu0 %1592
        %1594 = vadd.xlane.f32.xlu0 %v1531
        %v1595 = vpop.xlane.xlu0 %1594
        %vm1596 = vcmp.gt.f32.partialorder %v387, 0.0
        %vm1597 = vcmp.gt.f32.partialorder %v388, 0.0
        %v1630 = vlaneseq
        %v1631 = vand.u32 %v1630, 127
        %v1632 = vlaneseq
        %v1633 = vshrl.u32 %v1632, 7
        %v1634 = vsub.s32 %v1631, %v1633
        %v1635 = vrot.slane %v1533, %v1634
        %v1636 = vadd.s32 %v1631, 4294967288
        %v1637 = vlaneseq
        %v1638 = vshrl.u32 %v1637, 7
        %v1639 = vsub.s32 %v1636, %v1638
        %v1640 = vrot.slane %v1535, %v1639
        %vm1641 = vcmask 130112
        %v1642 = vsel %vm1641, %v1640, %v1635
        %v1643 = vlaneseq
        %v1644 = vshrl.u32 %v1643, 7
        %v1645 = vsub.s32 %v1631, %v1644
        %v1646 = vrot.slane %v1537, %v1645
        %v1647 = vlaneseq
        %v1648 = vshrl.u32 %v1647, 7
        %v1649 = vsub.s32 %v1636, %v1648
        %v1650 = vrot.slane %v1539, %v1649
        %v1651 = vsel %vm1641, %v1650, %v1646
        %v1652 = vlaneseq
        %v1653 = vshrl.u32 %v1652, 7
        %v1654 = vsub.s32 %v1631, %v1653
        %v1655 = vrot.slane %v1541, %v1654
        %v1656 = vlaneseq
        %v1657 = vshrl.u32 %v1656, 7
        %v1658 = vsub.s32 %v1636, %v1657
        %v1659 = vrot.slane %v1543, %v1658
        %v1660 = vsel %vm1641, %v1659, %v1655
        %v1661 = vlaneseq
        %v1662 = vshrl.u32 %v1661, 7
        %v1663 = vsub.s32 %v1631, %v1662
        %v1664 = vrot.slane %v1545, %v1663
        %v1665 = vlaneseq
        %v1666 = vshrl.u32 %v1665, 7
        %v1667 = vsub.s32 %v1636, %v1666
        %v1668 = vrot.slane %v1547, %v1667
        %v1669 = vsel %vm1641, %v1668, %v1664
        %v1670 = vlaneseq
        %v1671 = vshrl.u32 %v1670, 7
        %v1672 = vsub.s32 %v1631, %v1671
        %v1673 = vrot.slane %v1549, %v1672
        %v1674 = vlaneseq
        %v1675 = vshrl.u32 %v1674, 7
        %v1676 = vsub.s32 %v1636, %v1675
        %v1677 = vrot.slane %v1551, %v1676
        %v1678 = vsel %vm1641, %v1677, %v1673
        %v1679 = vlaneseq
        %v1680 = vshrl.u32 %v1679, 7
        %v1681 = vsub.s32 %v1631, %v1680
        %v1682 = vrot.slane %v1553, %v1681
        %v1683 = vlaneseq
        %v1684 = vshrl.u32 %v1683, 7
        %v1685 = vsub.s32 %v1636, %v1684
        %v1686 = vrot.slane %v1555, %v1685
        %v1687 = vsel %vm1641, %v1686, %v1682
        %v1688 = vlaneseq
        %v1689 = vshrl.u32 %v1688, 7
        %v1690 = vsub.s32 %v1631, %v1689
        %v1691 = vrot.slane %v1557, %v1690
        %v1692 = vlaneseq
        %v1693 = vshrl.u32 %v1692, 7
        %v1694 = vsub.s32 %v1636, %v1693
        %v1695 = vrot.slane %v1559, %v1694
        %v1696 = vsel %vm1641, %v1695, %v1691
        %v1697 = vlaneseq
        %v1698 = vshrl.u32 %v1697, 7
        %v1699 = vsub.s32 %v1631, %v1698
        %v1700 = vrot.slane %v1561, %v1699
        %v1701 = vlaneseq
        %v1702 = vshrl.u32 %v1701, 7
        %v1703 = vsub.s32 %v1636, %v1702
        %v1704 = vrot.slane %v1563, %v1703
        %v1705 = vsel %vm1641, %v1704, %v1700
        %v1706 = vlaneseq
        %v1707 = vshrl.u32 %v1706, 7
        %v1708 = vsub.s32 %v1631, %v1707
        %v1709 = vrot.slane %v1565, %v1708
        %v1710 = vlaneseq
        %v1711 = vshrl.u32 %v1710, 7
        %v1712 = vsub.s32 %v1636, %v1711
        %v1713 = vrot.slane %v1567, %v1712
        %v1714 = vsel %vm1641, %v1713, %v1709
        %v1715 = vlaneseq
        %v1716 = vshrl.u32 %v1715, 7
        %v1717 = vsub.s32 %v1631, %v1716
        %v1718 = vrot.slane %v1569, %v1717
        %v1719 = vlaneseq
        %v1720 = vshrl.u32 %v1719, 7
        %v1721 = vsub.s32 %v1636, %v1720
        %v1722 = vrot.slane %v1571, %v1721
        %v1723 = vsel %vm1641, %v1722, %v1718
        %v1724 = vlaneseq
        %v1725 = vshrl.u32 %v1724, 7
        %v1726 = vsub.s32 %v1631, %v1725
        %v1727 = vrot.slane %v1573, %v1726
        %v1728 = vlaneseq
        %v1729 = vshrl.u32 %v1728, 7
        %v1730 = vsub.s32 %v1636, %v1729
        %v1731 = vrot.slane %v1575, %v1730
        %v1732 = vsel %vm1641, %v1731, %v1727
        %v1733 = vlaneseq
        %v1734 = vshrl.u32 %v1733, 7
        %v1735 = vsub.s32 %v1631, %v1734
        %v1736 = vrot.slane %v1577, %v1735
        %v1737 = vlaneseq
        %v1738 = vshrl.u32 %v1737, 7
        %v1739 = vsub.s32 %v1636, %v1738
        %v1740 = vrot.slane %v1579, %v1739
        %v1741 = vsel %vm1641, %v1740, %v1736
        %v1742 = vlaneseq
        %v1743 = vshrl.u32 %v1742, 7
        %v1744 = vsub.s32 %v1631, %v1743
        %v1745 = vrot.slane %v1581, %v1744
        %v1746 = vlaneseq
        %v1747 = vshrl.u32 %v1746, 7
        %v1748 = vsub.s32 %v1636, %v1747
        %v1749 = vrot.slane %v1583, %v1748
        %v1750 = vsel %vm1641, %v1749, %v1745
        %v1751 = vlaneseq
        %v1752 = vshrl.u32 %v1751, 7
        %v1753 = vsub.s32 %v1631, %v1752
        %v1754 = vrot.slane %v1585, %v1753
        %v1755 = vlaneseq
        %v1756 = vshrl.u32 %v1755, 7
        %v1757 = vsub.s32 %v1636, %v1756
        %v1758 = vrot.slane %v1587, %v1757
        %v1759 = vsel %vm1641, %v1758, %v1754
        %v1760 = vlaneseq
        %v1761 = vshrl.u32 %v1760, 7
        %v1762 = vsub.s32 %v1631, %v1761
        %v1763 = vrot.slane %v1589, %v1762
        %v1764 = vlaneseq
        %v1765 = vshrl.u32 %v1764, 7
        %v1766 = vsub.s32 %v1636, %v1765
        %v1767 = vrot.slane %v1591, %v1766
        %v1768 = vsel %vm1641, %v1767, %v1763
        %v1769 = vlaneseq
        %v1770 = vshrl.u32 %v1769, 7
        %v1771 = vsub.s32 %v1631, %v1770
        %v1772 = vrot.slane %v1593, %v1771
        %v1773 = vlaneseq
        %v1774 = vshrl.u32 %v1773, 7
        %v1775 = vsub.s32 %v1636, %v1774
        %v1776 = vrot.slane %v1595, %v1775
        %v1777 = vsel %vm1641, %v1776, %v1772
        %vm1778 = vcmask 1041409
        %v1779 = vsel %vm1778, %v1651, %v1642
        %vm1780 = vcmask 1042434
        %v1781 = vsel %vm1780, %v1660, %v1779
        %vm1782 = vcmask 1043459
        %v1783 = vsel %vm1782, %v1669, %v1781
        %vm1784 = vcmask 1044484
        %v1785 = vsel %vm1784, %v1678, %v1783
        %vm1786 = vcmask 1045509
        %v1787 = vsel %vm1786, %v1687, %v1785
        %vm1788 = vcmask 1046534
        %v1789 = vsel %vm1788, %v1696, %v1787
        %vm1790 = vcmask 1047559
        %v1791 = vsel %vm1790, %v1705, %v1789
        %v1792 = vsel %vm1778, %v1723, %v1714
        %v1793 = vsel %vm1780, %v1732, %v1792
        %v1794 = vsel %vm1782, %v1741, %v1793
        %v1795 = vsel %vm1784, %v1750, %v1794
        %v1796 = vsel %vm1786, %v1759, %v1795
        %v1797 = vsel %vm1788, %v1768, %v1796
        %v1798 = vsel %vm1790, %v1777, %v1797
        %v1801 = vsel %vm1596, %v1791, -1e+30
        %v1802 = vsel %vm1597, %v1798, -1e+30
        %vm1803 = vcmask 130048
        %v1804 = vsel %vm1803, %v1801, -inf
        %1805 = vmax.xlane.f32.xlu0 %v1804
        %v1806 = vpop.xlane.xlu0 %1805
        %v1807 = vsel %vm1803, %v1802, -inf
        %1808 = vmax.xlane.f32.xlu0 %v1807
        %v1809 = vpop.xlane.xlu0 %1808
        %v1810 = vsub.f32 %v1801, %v1806
        %v1811 = vsub.f32 %v1802, %v1809
        %v1812 = vmul.f32 %v1810, 1.442695
        %v1813 = vpow.pop %v1812
        %v1814 = vmul.f32 %v1811, 1.442695
        %v1815 = vpow.pop %v1814
        %v1816 = vmul.f32 %v1813, %v387
        %v1817 = vmul.f32 %v1815, %v388
        %v1818 = vsel %vm1803, %v1816, 0.0
        %1819 = vadd.xlane.f32.xlu0 %v1818
        %v1820 = vpop.xlane.xlu0 %1819
        %v1821 = vsel %vm1803, %v1817, 0.0
        %1822 = vadd.xlane.f32.xlu0 %v1821
        %v1823 = vpop.xlane.xlu0 %1822
        %v1824 = vmax.f32 %v1820, 1e-09
        %v1825 = vmax.f32 %v1823, 1e-09
        %v1826 = vrcp.pop %v1824
        %v1827 = vrcp.pop %v1825
        %v1828 = vmul.f32 %v1816, %v1826
        %v1829 = vmul.f32 %v1817, %v1827
        %v1830 = vlaneseq
        %v1831 = vshrl.u32 %v1830, 7
        %v1832 = vsub.s32 0, %v1831
        %v1833 = vrot.slane %v1828, %v1832
        %1835 = vbcast.lane.b32.xlu0 %v1833, 256
        %v1836 = vpop.permute.xlu0 %1835
        %s1838 = sor.u32 256, 8
        %1839 = vbcast.lane.b32.xlu0 %v1833, %s1838
        %v1840 = vpop.permute.xlu0 %1839
        %v1841 = vlaneseq
        %v1842 = vshrl.u32 %v1841, 7
        %v1843 = vsub.s32 1, %v1842
        %v1844 = vrot.slane %v1828, %v1843
        %1846 = vbcast.lane.b32.xlu0 %v1844, 256
        %v1847 = vpop.permute.xlu0 %1846
        %s1849 = sor.u32 256, 8
        %1850 = vbcast.lane.b32.xlu0 %v1844, %s1849
        %v1851 = vpop.permute.xlu0 %1850
        %v1852 = vlaneseq
        %v1853 = vshrl.u32 %v1852, 7
        %v1854 = vsub.s32 2, %v1853
        %v1855 = vrot.slane %v1828, %v1854
        %1857 = vbcast.lane.b32.xlu0 %v1855, 256
        %v1858 = vpop.permute.xlu0 %1857
        %s1860 = sor.u32 256, 8
        %1861 = vbcast.lane.b32.xlu0 %v1855, %s1860
        %v1862 = vpop.permute.xlu0 %1861
        %v1863 = vlaneseq
        %v1864 = vshrl.u32 %v1863, 7
        %v1865 = vsub.s32 3, %v1864
        %v1866 = vrot.slane %v1828, %v1865
        %1868 = vbcast.lane.b32.xlu0 %v1866, 256
        %v1869 = vpop.permute.xlu0 %1868
        %s1871 = sor.u32 256, 8
        %1872 = vbcast.lane.b32.xlu0 %v1866, %s1871
        %v1873 = vpop.permute.xlu0 %1872
        %v1874 = vlaneseq
        %v1875 = vshrl.u32 %v1874, 7
        %v1876 = vsub.s32 4, %v1875
        %v1877 = vrot.slane %v1828, %v1876
        %1879 = vbcast.lane.b32.xlu0 %v1877, 256
        %v1880 = vpop.permute.xlu0 %1879
        %s1882 = sor.u32 256, 8
        %1883 = vbcast.lane.b32.xlu0 %v1877, %s1882
        %v1884 = vpop.permute.xlu0 %1883
        %v1885 = vlaneseq
        %v1886 = vshrl.u32 %v1885, 7
        %v1887 = vsub.s32 5, %v1886
        %v1888 = vrot.slane %v1828, %v1887
        %1890 = vbcast.lane.b32.xlu0 %v1888, 256
        %v1891 = vpop.permute.xlu0 %1890
        %s1893 = sor.u32 256, 8
        %1894 = vbcast.lane.b32.xlu0 %v1888, %s1893
        %v1895 = vpop.permute.xlu0 %1894
        %v1896 = vlaneseq
        %v1897 = vshrl.u32 %v1896, 7
        %v1898 = vsub.s32 6, %v1897
        %v1899 = vrot.slane %v1828, %v1898
        %1901 = vbcast.lane.b32.xlu0 %v1899, 256
        %v1902 = vpop.permute.xlu0 %1901
        %s1904 = sor.u32 256, 8
        %1905 = vbcast.lane.b32.xlu0 %v1899, %s1904
        %v1906 = vpop.permute.xlu0 %1905
        %v1907 = vlaneseq
        %v1908 = vshrl.u32 %v1907, 7
        %v1909 = vsub.s32 7, %v1908
        %v1910 = vrot.slane %v1828, %v1909
        %1912 = vbcast.lane.b32.xlu0 %v1910, 256
        %v1913 = vpop.permute.xlu0 %1912
        %s1915 = sor.u32 256, 8
        %1916 = vbcast.lane.b32.xlu0 %v1910, %s1915
        %v1917 = vpop.permute.xlu0 %1916
        %v1918 = vlaneseq
        %v1919 = vshrl.u32 %v1918, 7
        %v1920 = vsub.s32 0, %v1919
        %v1921 = vrot.slane %v1829, %v1920
        %1923 = vbcast.lane.b32.xlu0 %v1921, 256
        %v1924 = vpop.permute.xlu0 %1923
        %s1926 = sor.u32 256, 8
        %1927 = vbcast.lane.b32.xlu0 %v1921, %s1926
        %v1928 = vpop.permute.xlu0 %1927
        %v1929 = vlaneseq
        %v1930 = vshrl.u32 %v1929, 7
        %v1931 = vsub.s32 1, %v1930
        %v1932 = vrot.slane %v1829, %v1931
        %1934 = vbcast.lane.b32.xlu0 %v1932, 256
        %v1935 = vpop.permute.xlu0 %1934
        %s1937 = sor.u32 256, 8
        %1938 = vbcast.lane.b32.xlu0 %v1932, %s1937
        %v1939 = vpop.permute.xlu0 %1938
        %v1940 = vlaneseq
        %v1941 = vshrl.u32 %v1940, 7
        %v1942 = vsub.s32 2, %v1941
        %v1943 = vrot.slane %v1829, %v1942
        %1945 = vbcast.lane.b32.xlu0 %v1943, 256
        %v1946 = vpop.permute.xlu0 %1945
        %s1948 = sor.u32 256, 8
        %1949 = vbcast.lane.b32.xlu0 %v1943, %s1948
        %v1950 = vpop.permute.xlu0 %1949
        %v1951 = vlaneseq
        %v1952 = vshrl.u32 %v1951, 7
        %v1953 = vsub.s32 3, %v1952
        %v1954 = vrot.slane %v1829, %v1953
        %1956 = vbcast.lane.b32.xlu0 %v1954, 256
        %v1957 = vpop.permute.xlu0 %1956
        %s1959 = sor.u32 256, 8
        %1960 = vbcast.lane.b32.xlu0 %v1954, %s1959
        %v1961 = vpop.permute.xlu0 %1960
        %v1962 = vlaneseq
        %v1963 = vshrl.u32 %v1962, 7
        %v1964 = vsub.s32 4, %v1963
        %v1965 = vrot.slane %v1829, %v1964
        %1967 = vbcast.lane.b32.xlu0 %v1965, 256
        %v1968 = vpop.permute.xlu0 %1967
        %s1970 = sor.u32 256, 8
        %1971 = vbcast.lane.b32.xlu0 %v1965, %s1970
        %v1972 = vpop.permute.xlu0 %1971
        %v1973 = vlaneseq
        %v1974 = vshrl.u32 %v1973, 7
        %v1975 = vsub.s32 5, %v1974
        %v1976 = vrot.slane %v1829, %v1975
        %1978 = vbcast.lane.b32.xlu0 %v1976, 256
        %v1979 = vpop.permute.xlu0 %1978
        %s1981 = sor.u32 256, 8
        %1982 = vbcast.lane.b32.xlu0 %v1976, %s1981
        %v1983 = vpop.permute.xlu0 %1982
        %v1984 = vlaneseq
        %v1985 = vshrl.u32 %v1984, 7
        %v1986 = vsub.s32 6, %v1985
        %v1987 = vrot.slane %v1829, %v1986
        %1989 = vbcast.lane.b32.xlu0 %v1987, 256
        %v1990 = vpop.permute.xlu0 %1989
        %s1992 = sor.u32 256, 8
        %1993 = vbcast.lane.b32.xlu0 %v1987, %s1992
        %v1994 = vpop.permute.xlu0 %1993
        %v1995 = vlaneseq
        %v1996 = vshrl.u32 %v1995, 7
        %v1997 = vsub.s32 7, %v1996
        %v1998 = vrot.slane %v1829, %v1997
        %2000 = vbcast.lane.b32.xlu0 %v1998, 256
        %v2001 = vpop.permute.xlu0 %2000
        %s2003 = sor.u32 256, 8
        %2004 = vbcast.lane.b32.xlu0 %v1998, %s2003
        %v2005 = vpop.permute.xlu0 %2004
        %v2006 = vmul.f32 %v1464, %v1836
        %v2007 = vmul.f32 %v1465, %v1840
        %v2008 = vmul.f32 %v1466, %v1847
        %v2009 = vmul.f32 %v1467, %v1851
        %v2010 = vmul.f32 %v1468, %v1858
        %v2011 = vmul.f32 %v1469, %v1862
        %v2012 = vmul.f32 %v1470, %v1869
        %v2013 = vmul.f32 %v1471, %v1873
        %v2014 = vmul.f32 %v1472, %v1880
        %v2015 = vmul.f32 %v1473, %v1884
        %v2016 = vmul.f32 %v1474, %v1891
        %v2017 = vmul.f32 %v1475, %v1895
        %v2018 = vmul.f32 %v1476, %v1902
        %v2019 = vmul.f32 %v1477, %v1906
        %v2020 = vmul.f32 %v1478, %v1913
        %v2021 = vmul.f32 %v1479, %v1917
        %v2022 = vmul.f32 %v1480, %v1924
        %v2023 = vmul.f32 %v1481, %v1928
        %v2024 = vmul.f32 %v1482, %v1935
        %v2025 = vmul.f32 %v1483, %v1939
        %v2026 = vmul.f32 %v1484, %v1946
        %v2027 = vmul.f32 %v1485, %v1950
        %v2028 = vmul.f32 %v1486, %v1957
        %v2029 = vmul.f32 %v1487, %v1961
        %v2030 = vmul.f32 %v1488, %v1968
        %v2031 = vmul.f32 %v1489, %v1972
        %v2032 = vmul.f32 %v1490, %v1979
        %v2033 = vmul.f32 %v1491, %v1983
        %v2034 = vmul.f32 %v1492, %v1990
        %v2035 = vmul.f32 %v1493, %v1994
        %v2036 = vmul.f32 %v1494, %v2001
        %v2037 = vmul.f32 %v1495, %v2005
        %v2038 = vadd.f32 %v2006, %v2007
        %v2039 = vrot.slane %v2038, 4
        %v2040 = vadd.f32 %v2038, %v2039
        %v2041 = vrot.slane %v2040, 2
        %v2042 = vadd.f32 %v2040, %v2041
        %v2043 = vrot.slane %v2042, 1
        %v2044 = vadd.f32 %v2042, %v2043
        %v2045 = vadd.f32 %v2008, %v2009
        %v2046 = vrot.slane %v2045, 4
        %v2047 = vadd.f32 %v2045, %v2046
        %v2048 = vrot.slane %v2047, 2
        %v2049 = vadd.f32 %v2047, %v2048
        %v2050 = vrot.slane %v2049, 1
        %v2051 = vadd.f32 %v2049, %v2050
        %v2052 = vadd.f32 %v2010, %v2011
        %v2053 = vrot.slane %v2052, 4
        %v2054 = vadd.f32 %v2052, %v2053
        %v2055 = vrot.slane %v2054, 2
        %v2056 = vadd.f32 %v2054, %v2055
        %v2057 = vrot.slane %v2056, 1
        %v2058 = vadd.f32 %v2056, %v2057
        %v2059 = vadd.f32 %v2012, %v2013
        %v2060 = vrot.slane %v2059, 4
        %v2061 = vadd.f32 %v2059, %v2060
        %v2062 = vrot.slane %v2061, 2
        %v2063 = vadd.f32 %v2061, %v2062
        %v2064 = vrot.slane %v2063, 1
        %v2065 = vadd.f32 %v2063, %v2064
        %v2066 = vadd.f32 %v2014, %v2015
        %v2067 = vrot.slane %v2066, 4
        %v2068 = vadd.f32 %v2066, %v2067
        %v2069 = vrot.slane %v2068, 2
        %v2070 = vadd.f32 %v2068, %v2069
        %v2071 = vrot.slane %v2070, 1
        %v2072 = vadd.f32 %v2070, %v2071
        %v2073 = vadd.f32 %v2016, %v2017
        %v2074 = vrot.slane %v2073, 4
        %v2075 = vadd.f32 %v2073, %v2074
        %v2076 = vrot.slane %v2075, 2
        %v2077 = vadd.f32 %v2075, %v2076
        %v2078 = vrot.slane %v2077, 1
        %v2079 = vadd.f32 %v2077, %v2078
        %v2080 = vadd.f32 %v2018, %v2019
        %v2081 = vrot.slane %v2080, 4
        %v2082 = vadd.f32 %v2080, %v2081
        %v2083 = vrot.slane %v2082, 2
        %v2084 = vadd.f32 %v2082, %v2083
        %v2085 = vrot.slane %v2084, 1
        %v2086 = vadd.f32 %v2084, %v2085
        %v2087 = vadd.f32 %v2020, %v2021
        %v2088 = vrot.slane %v2087, 4
        %v2089 = vadd.f32 %v2087, %v2088
        %v2090 = vrot.slane %v2089, 2
        %v2091 = vadd.f32 %v2089, %v2090
        %v2092 = vrot.slane %v2091, 1
        %v2093 = vadd.f32 %v2091, %v2092
        %v2094 = vadd.f32 %v2022, %v2023
        %v2095 = vrot.slane %v2094, 4
        %v2096 = vadd.f32 %v2094, %v2095
        %v2097 = vrot.slane %v2096, 2
        %v2098 = vadd.f32 %v2096, %v2097
        %v2099 = vrot.slane %v2098, 1
        %v2100 = vadd.f32 %v2098, %v2099
        %v2101 = vadd.f32 %v2024, %v2025
        %v2102 = vrot.slane %v2101, 4
        %v2103 = vadd.f32 %v2101, %v2102
        %v2104 = vrot.slane %v2103, 2
        %v2105 = vadd.f32 %v2103, %v2104
        %v2106 = vrot.slane %v2105, 1
        %v2107 = vadd.f32 %v2105, %v2106
        %v2108 = vadd.f32 %v2026, %v2027
        %v2109 = vrot.slane %v2108, 4
        %v2110 = vadd.f32 %v2108, %v2109
        %v2111 = vrot.slane %v2110, 2
        %v2112 = vadd.f32 %v2110, %v2111
        %v2113 = vrot.slane %v2112, 1
        %v2114 = vadd.f32 %v2112, %v2113
        %v2115 = vadd.f32 %v2028, %v2029
        %v2116 = vrot.slane %v2115, 4
        %v2117 = vadd.f32 %v2115, %v2116
        %v2118 = vrot.slane %v2117, 2
        %v2119 = vadd.f32 %v2117, %v2118
        %v2120 = vrot.slane %v2119, 1
        %v2121 = vadd.f32 %v2119, %v2120
        %v2122 = vadd.f32 %v2030, %v2031
        %v2123 = vrot.slane %v2122, 4
        %v2124 = vadd.f32 %v2122, %v2123
        %v2125 = vrot.slane %v2124, 2
        %v2126 = vadd.f32 %v2124, %v2125
        %v2127 = vrot.slane %v2126, 1
        %v2128 = vadd.f32 %v2126, %v2127
        %v2129 = vadd.f32 %v2032, %v2033
        %v2130 = vrot.slane %v2129, 4
        %v2131 = vadd.f32 %v2129, %v2130
        %v2132 = vrot.slane %v2131, 2
        %v2133 = vadd.f32 %v2131, %v2132
        %v2134 = vrot.slane %v2133, 1
        %v2135 = vadd.f32 %v2133, %v2134
        %v2136 = vadd.f32 %v2034, %v2035
        %v2137 = vrot.slane %v2136, 4
        %v2138 = vadd.f32 %v2136, %v2137
        %v2139 = vrot.slane %v2138, 2
        %v2140 = vadd.f32 %v2138, %v2139
        %v2141 = vrot.slane %v2140, 1
        %v2142 = vadd.f32 %v2140, %v2141
        %v2143 = vadd.f32 %v2036, %v2037
        %v2144 = vrot.slane %v2143, 4
        %v2145 = vadd.f32 %v2143, %v2144
        %v2146 = vrot.slane %v2145, 2
        %v2147 = vadd.f32 %v2145, %v2146
        %v2148 = vrot.slane %v2147, 1
        %v2149 = vadd.f32 %v2147, %v2148
        %v2150 = vpack.c.bf16 %v2044, %v2044
        %v2151 = vpack.c.bf16 %v2051, %v2051
        %v2152 = vpack.c.bf16 %v2058, %v2058
        %v2153 = vpack.c.bf16 %v2065, %v2065
        %v2154 = vpack.c.bf16 %v2072, %v2072
        %v2155 = vpack.c.bf16 %v2079, %v2079
        %v2156 = vpack.c.bf16 %v2086, %v2086
        %v2157 = vpack.c.bf16 %v2093, %v2093
        %v2158 = vpack.c.bf16 %v2100, %v2100
        %v2159 = vpack.c.bf16 %v2107, %v2107
        %v2160 = vpack.c.bf16 %v2114, %v2114
        %v2161 = vpack.c.bf16 %v2121, %v2121
        %v2162 = vpack.c.bf16 %v2128, %v2128
        %v2163 = vpack.c.bf16 %v2135, %v2135
        %v2164 = vpack.c.bf16 %v2142, %v2142
        %v2165 = vpack.c.bf16 %v2149, %v2149
        %v2166 = vlaneseq
        %v2167 = vshrl.u32 %v2166, 7
        %v2168 = vsub.s32 0, %v2167
        %v2169 = vrot.slane %v458, %v2168
        %v2186 = vunpack.c.l.b16 %v2150
        %v2187 = vunpack.c.l.b16 %v2151
        %v2188 = vunpack.c.l.b16 %v2152
        %v2189 = vunpack.c.l.b16 %v2153
        %v2190 = vunpack.c.l.b16 %v2154
        %v2191 = vunpack.c.l.b16 %v2155
        %v2192 = vunpack.c.l.b16 %v2156
        %v2193 = vunpack.c.l.b16 %v2157
        %v2194 = vunpack.c.l.b16 %v2158
        %v2195 = vunpack.c.l.b16 %v2159
        %v2196 = vunpack.c.l.b16 %v2160
        %v2197 = vunpack.c.l.b16 %v2161
        %v2198 = vunpack.c.l.b16 %v2162
        %v2199 = vunpack.c.l.b16 %v2163
        %v2200 = vunpack.c.l.b16 %v2164
        %v2201 = vunpack.c.l.b16 %v2165
        %v2202 = vsel %vm1778, %v2187, %v2186
        %v2203 = vsel %vm1780, %v2188, %v2202
        %v2204 = vsel %vm1782, %v2189, %v2203
        %v2205 = vsel %vm1784, %v2190, %v2204
        %v2206 = vsel %vm1786, %v2191, %v2205
        %v2207 = vsel %vm1788, %v2192, %v2206
        %v2208 = vsel %vm1790, %v2193, %v2207
        %v2209 = vsel %vm1778, %v2195, %v2194
        %v2210 = vsel %vm1780, %v2196, %v2209
        %v2211 = vsel %vm1782, %v2197, %v2210
        %v2212 = vsel %vm1784, %v2198, %v2211
        %v2213 = vsel %vm1786, %v2199, %v2212
        %v2214 = vsel %vm1788, %v2200, %v2213
        %v2215 = vsel %vm1790, %v2201, %v2214
        %v2216 = vpack.c.b16 %v2215, %v2208
        %v2234 = vunpack.c.l.b16 %v423
        %v2235 = vunpack.c.l.b16 %v424
        %v2236 = vunpack.c.l.b16 %v425
        %v2237 = vunpack.c.l.b16 %v426
        %v2238 = vunpack.c.l.b16 %v427
        %v2239 = vunpack.c.l.b16 %v428
        %v2240 = vunpack.c.l.b16 %v429
        %v2241 = vunpack.c.l.b16 %v430
        %v2242 = vunpack.c.l.b16 %v431
        %v2243 = vunpack.c.l.b16 %v432
        %v2244 = vunpack.c.l.b16 %v433
        %v2245 = vunpack.c.l.b16 %v434
        %v2246 = vunpack.c.l.b16 %v435
        %v2247 = vunpack.c.l.b16 %v436
        %v2248 = vunpack.c.l.b16 %v437
        %v2249 = vunpack.c.l.b16 %v438
        %v2250 = vpack.c.b16 %v2235, %v2234
        %v2251 = vpack.c.b16 %v2237, %v2236
        %v2252 = vpack.c.b16 %v2239, %v2238
        %v2253 = vpack.c.b16 %v2241, %v2240
        %v2254 = vpack.c.b16 %v2243, %v2242
        %v2255 = vpack.c.b16 %v2245, %v2244
        %v2256 = vpack.c.b16 %v2247, %v2246
        %v2257 = vpack.c.b16 %v2249, %v2248
        %2266 = vmatprep.subr.bf16.mxu0 0
        %2267 = vmatpush1.bf16.msra.mxu0 %v2250
        %2268 = vmatprep.subr.bf16.mxu0 0
        %2269 = vmatpush1.bf16.msra.mxu0 %v2251
        %2270 = vmatprep.subr.bf16.mxu0 0
        %2271 = vmatpush1.bf16.msra.mxu0 %v2252
        %2272 = vmatprep.subr.bf16.mxu0 0
        %2273 = vmatpush1.bf16.msra.mxu0 %v2253
        %2274 = vmatprep.subr.bf16.mxu0 0
        %2275 = vmatpush1.bf16.msra.mxu0 %v2254
        %2276 = vmatprep.subr.bf16.mxu0 0
        %2277 = vmatpush1.bf16.msra.mxu0 %v2255
        %2278 = vmatprep.subr.bf16.mxu0 0
        %2279 = vmatpush1.bf16.msra.mxu0 %v2256
        %2280 = vmatprep.subr.bf16.mxu0 0
        %2281 = vmatpush1.bf16.msra.mxu0 %v2257
        %2282 = vmatprep.subr.bf16.mxu0 0
        %2283 = vmatpush1.bf16.msra.mxu0 0
        %2284 = vmatprep.subr.bf16.mxu0 0
        %2285 = vmatpush1.bf16.msra.mxu0 0
        %2286 = vmatprep.subr.bf16.mxu0 0
        %2287 = vmatpush1.bf16.msra.mxu0 0
        %2288 = vmatprep.subr.bf16.mxu0 0
        %2289 = vmatpush1.bf16.msra.mxu0 0
        %2290 = vmatprep.subr.bf16.mxu0 0
        %2291 = vmatpush1.bf16.msra.mxu0 0
        %2292 = vmatprep.subr.bf16.mxu0 0
        %2293 = vmatpush1.bf16.msra.mxu0 0
        %2294 = vmatprep.subr.bf16.mxu0 0
        %2295 = vmatpush1.bf16.msra.mxu0 0
        %2296 = vmatprep.subr.bf16.mxu0 0
        %2297 = vmatpush1.bf16.msra.mxu0 0
        %2298 = vmatprep.mubr.bf16.mxu0 0
        %2299 = vmatmul.mubr.bf16.gmra.mrb[0].mxu0 %v2216
        %v2300 = vpop.f32.mrb[0].mxu0
        %v2301 = vadd.f32 %v2169, %v2300
        %v2302 = vpop.f32.mrb[0].mxu0
        %v2303 = vpop.f32.mrb[0].mxu0
        %v2304 = vadd.f32 %v2169, %v2303
        %v2305 = vpop.f32.mrb[0].mxu0
        %2306 = vdwg.mxu0
        %v2307 = vmax.f32 %v2301, 0.0
        %v2308 = vmax.f32 %v2304, 0.0
        %v2309 = vpack.c.bf16 %v2308, %v2307
        %v2310 = vlaneseq
        %v2311 = vshrl.u32 %v2310, 7
        %v2312 = vsub.s32 0, %v2311
        %v2313 = vrot.slane %v459, %v2312
        %v2330 = vunpack.c.l.b16 %v440
        %v2331 = vunpack.c.l.b16 %v441
        %v2332 = vunpack.c.l.b16 %v442
        %v2333 = vunpack.c.l.b16 %v443
        %v2334 = vunpack.c.l.b16 %v444
        %v2335 = vunpack.c.l.b16 %v445
        %v2336 = vunpack.c.l.b16 %v446
        %v2337 = vunpack.c.l.b16 %v447
        %v2338 = vunpack.c.l.b16 %v448
        %v2339 = vunpack.c.l.b16 %v449
        %v2340 = vunpack.c.l.b16 %v450
        %v2341 = vunpack.c.l.b16 %v451
        %v2342 = vunpack.c.l.b16 %v452
        %v2343 = vunpack.c.l.b16 %v453
        %v2344 = vunpack.c.l.b16 %v454
        %v2345 = vunpack.c.l.b16 %v455
        %v2346 = vpack.c.b16 %v2331, %v2330
        %v2347 = vpack.c.b16 %v2333, %v2332
        %v2348 = vpack.c.b16 %v2335, %v2334
        %v2349 = vpack.c.b16 %v2337, %v2336
        %v2350 = vpack.c.b16 %v2339, %v2338
        %v2351 = vpack.c.b16 %v2341, %v2340
        %v2352 = vpack.c.b16 %v2343, %v2342
        %v2353 = vpack.c.b16 %v2345, %v2344
        %2362 = vmatprep.subr.bf16.mxu0 0
        %2363 = vmatpush1.bf16.msra.mxu0 %v2346
        %2364 = vmatprep.subr.bf16.mxu0 0
        %2365 = vmatpush1.bf16.msra.mxu0 %v2347
        %2366 = vmatprep.subr.bf16.mxu0 0
        %2367 = vmatpush1.bf16.msra.mxu0 %v2348
        %2368 = vmatprep.subr.bf16.mxu0 0
        %2369 = vmatpush1.bf16.msra.mxu0 %v2349
        %2370 = vmatprep.subr.bf16.mxu0 0
        %2371 = vmatpush1.bf16.msra.mxu0 %v2350
        %2372 = vmatprep.subr.bf16.mxu0 0
        %2373 = vmatpush1.bf16.msra.mxu0 %v2351
        %2374 = vmatprep.subr.bf16.mxu0 0
        %2375 = vmatpush1.bf16.msra.mxu0 %v2352
        %2376 = vmatprep.subr.bf16.mxu0 0
        %2377 = vmatpush1.bf16.msra.mxu0 %v2353
        %2378 = vmatprep.subr.bf16.mxu0 0
        %2379 = vmatpush1.bf16.msra.mxu0 0
        %2380 = vmatprep.subr.bf16.mxu0 0
        %2381 = vmatpush1.bf16.msra.mxu0 0
        %2382 = vmatprep.subr.bf16.mxu0 0
        %2383 = vmatpush1.bf16.msra.mxu0 0
        %2384 = vmatprep.subr.bf16.mxu0 0
        %2385 = vmatpush1.bf16.msra.mxu0 0
        %2386 = vmatprep.subr.bf16.mxu0 0
        %2387 = vmatpush1.bf16.msra.mxu0 0
        %2388 = vmatprep.subr.bf16.mxu0 0
        %2389 = vmatpush1.bf16.msra.mxu0 0
        %2390 = vmatprep.subr.bf16.mxu0 0
        %2391 = vmatpush1.bf16.msra.mxu0 0
        %2392 = vmatprep.subr.bf16.mxu0 0
        %2393 = vmatpush1.bf16.msra.mxu0 0
        %2394 = vmatprep.mubr.bf16.mxu0 0
        %2395 = vmatmul.mubr.bf16.gmra.mrb[0].mxu0 %v2309
        %v2396 = vpop.f32.mrb[0].mxu0
        %v2397 = vadd.f32 %v2313, %v2396
        %v2398 = vpop.f32.mrb[0].mxu0
        %v2399 = vpop.f32.mrb[0].mxu0
        %v2400 = vadd.f32 %v2313, %v2399
        %v2401 = vpop.f32.mrb[0].mxu0
        %2402 = vdwg.mxu0
        %v2405 = vrot.slane %v2397, 1
        %v2406 = vrot.slane %v2397, 2
        %v2407 = vrot.slane %v2397, 3
        %v2408 = vrot.slane %v2397, 4
        %v2409 = vrot.slane %v2397, 5
        %v2410 = vrot.slane %v2397, 6
        %v2411 = vrot.slane %v2397, 7
        %v2412 = vrot.slane %v2400, 1
        %v2413 = vrot.slane %v2400, 2
        %v2414 = vrot.slane %v2400, 3
        %v2415 = vrot.slane %v2400, 4
        %v2416 = vrot.slane %v2400, 5
        %v2417 = vrot.slane %v2400, 6
        %v2418 = vrot.slane %v2400, 7
        %v2435 = vadd.f32 %v2044, %v2397
        %v2436 = vadd.f32 %v2051, %v2405
        %v2437 = vadd.f32 %v2058, %v2406
        %v2438 = vadd.f32 %v2065, %v2407
        %v2439 = vadd.f32 %v2072, %v2408
        %v2440 = vadd.f32 %v2079, %v2409
        %v2441 = vadd.f32 %v2086, %v2410
        %v2442 = vadd.f32 %v2093, %v2411
        %v2443 = vadd.f32 %v2100, %v2400
        %v2444 = vadd.f32 %v2107, %v2412
        %v2445 = vadd.f32 %v2114, %v2413
        %v2446 = vadd.f32 %v2121, %v2414
        %v2447 = vadd.f32 %v2128, %v2415
        %v2448 = vadd.f32 %v2135, %v2416
        %v2449 = vadd.f32 %v2142, %v2417
        %v2450 = vadd.f32 %v2149, %v2418
        %v2467 = vrot.slane %v2436, 7
        %v2468 = vsel %vm1778, %v2467, %v2435
        %v2469 = vrot.slane %v2437, 6
        %v2470 = vsel %vm1780, %v2469, %v2468
        %v2471 = vrot.slane %v2438, 5
        %v2472 = vsel %vm1782, %v2471, %v2470
        %v2473 = vrot.slane %v2439, 4
        %v2474 = vsel %vm1784, %v2473, %v2472
        %v2475 = vrot.slane %v2440, 3
        %v2476 = vsel %vm1786, %v2475, %v2474
        %v2477 = vrot.slane %v2441, 2
        %v2478 = vsel %vm1788, %v2477, %v2476
        %v2479 = vrot.slane %v2442, 1
        %v2480 = vsel %vm1790, %v2479, %v2478
        %v2481 = vrot.slane %v2444, 7
        %v2482 = vsel %vm1778, %v2481, %v2443
        %v2483 = vrot.slane %v2445, 6
        %v2484 = vsel %vm1780, %v2483, %v2482
        %v2485 = vrot.slane %v2446, 5
        %v2486 = vsel %vm1782, %v2485, %v2484
        %v2487 = vrot.slane %v2447, 4
        %v2488 = vsel %vm1784, %v2487, %v2486
        %v2489 = vrot.slane %v2448, 3
        %v2490 = vsel %vm1786, %v2489, %v2488
        %v2491 = vrot.slane %v2449, 2
        %v2492 = vsel %vm1788, %v2491, %v2490
        %v2493 = vrot.slane %v2450, 1
        %v2494 = vsel %vm1790, %v2493, %v2492
        %2497 = vst [vmem:[%s313] sm:$0xff] %v2480
        %2498 = vst [vmem:[%s313 + $0x8] sm:$0xff] %v2494
        %s2499 = sand.u32 %s153, 1
        %s2500 = scalar_lea.sflag [#allocation4], %s2499
        %s2501 = sand.u32 %s153, 1
        %s2502 = smul.addr %s2501, 16
        %s2503 = scalar_lea.vmem [#allocation8], %s2502
        // Predicated region
        $region53: #{tpu_custom_call.1} parent=39 // pred_check
          %p2504 = pneg %p163
        $region54: #{tpu_custom_call.1} parent=39 // pred_check_branch
          %2506 = sbr.rel (%p2504) target = $region56
        $region55: #{tpu_custom_call.1} parent=39 // pred_region
          %s2507 = smul.u32 2, %s25
          %s2509 = ssub.s32 256, 256
          %2510 = vsyncadd %s2500, %s2509
          %s2511 = smul.addr %s2507, 128
          %s2512 = scalar_lea.hbm %s5, %s2511
          %s2513 = sshll.u32 %s2503, 4
          %s2514 = int_to_ptr.vmem [resolvable:$true] %s2513
          %2519 = dma.vmem_to_hbm [thread:$0]  %s2514, 256, %s2512, %s2500, 128, 128, 8
        $region56: #{tpu_custom_call.1} parent=39 // pred_fallthru
          _
      $region40: #{tpu_custom_call.1} parent=5 // pred_fallthru
        _
      %p2520 = scmp.le.s32.totalorder 2, %s20
      // Predicated region
      $region57: #{tpu_custom_call.1} parent=5 // pred_check
        %p2521 = pneg %p2520
      $region58: #{tpu_custom_call.1} parent=5 // pred_check_branch
        %2523 = sbr.rel (%p2521) target = $region60
      $region59: #{tpu_custom_call.1} parent=5 // pred_region
        %s2524 = ssub.s32 %s20, 2
        // Predicated region
        $region61: #{tpu_custom_call.1} parent=59 // pred_check
          %p2525 = pneg %p169
        $region62: #{tpu_custom_call.1} parent=59 // pred_check_branch
          %2527 = sbr.rel (%p2525) target = $region64
        $region63: #{tpu_custom_call.1} parent=59 // pred_region
          %s2528 = sand.u32 %s154, 1
          %s2529 = scalar_lea.sflag [#allocation4], %s2528
          %s2530 = sand.u32 %s154, 1
          %s2531 = smul.addr %s2530, 16
          %s2532 = scalar_lea.vmem [#allocation8], %s2531
          %2533 = dma.done %s2529, 256
        $region64: #{tpu_custom_call.1} parent=59 // pred_fallthru
          _
      $region60: #{tpu_custom_call.1} parent=5 // pred_fallthru
        _
    $region6: #{tpu_custom_call.1} parent=1 // loop_footer
      %s24 = sadd.s32 1, %s20
    $region7: #{tpu_custom_call.1} parent=1 // loop_footer_branch
      %19 = sbr.rel target = $region3
    $region8: #{tpu_custom_call.1} parent=1 // loop_exit
      _
    %2534 = vsyncpa [#allocation3], 1
    %s2535 = scalar_lea.sflag [#allocation3], 1
    %2536 = vsyncpa %s2535, 1
    %2537 = vsyncpa [#allocation6], 1
    %s2538 = scalar_lea.sflag [#allocation6], 1
    %2539 = vsyncpa %s2538, 1
    %2540 = vsyncpa [#allocation4], 1
    %s2541 = scalar_lea.sflag [#allocation4], 1
    %2542 = vsyncpa %s2541, 1

</llo_original>
